<compile_context>
chip_gen: v5e
topology: v5e:2x2
jax: 0.10.0
libtpu: 0.0.40
codegen_flags: <defaults>
</compile_context>

<pallas_src>
import jax
import jax.numpy as jnp
from jax.experimental import pallas as pl
from jax.experimental.pallas import tpu as pltpu

N_USERS = 943
N_TOPICS = 18
EMB_DIM = 20
AUG_DIM = EMB_DIM + 2             # emb | bias(+offset) | ones
AUG_PAD = 24                      # pad to multiple of 8 so the (48, TILE) split is sublane-aligned
N_TOTAL = N_USERS + N_TOPICS      # 961 columns of the block-diagonal combined table
MAX_TILE = 1024                   # multiple of 256 (hence also of 128 for v5e)


def _round_up(x, m):
    return ((x + m - 1) // m) * m


def _choose_tile(batch):
    # Keep >= 2 grid steps when the batch allows it so the "parallel" axis can shard
    # across v7x's two TensorCores; cap at MAX_TILE; keep multiples of 256.
    return min(MAX_TILE, _round_up(max(1, -(-batch // 2)), 256))


def mf_kernel(data_ref, hi_ref, lo_ref, out_ref):
    idx = data_ref[...]                                            # (2, TILE) int32
    tile = idx.shape[1]
    user = jnp.clip(idx[0:1, :], 0, N_USERS - 1)                   # (1, TILE)
    topic = jnp.clip(idx[1:2, :], 0, N_TOPICS - 1) + N_USERS       # (1, TILE) combined column id

    # Combined one-hot: two 1s per column (user row + topic row). Exact in bf16.
    iota = jax.lax.broadcasted_iota(jnp.int32, (N_TOTAL, tile), 0)
    onehot = ((iota == user) | (iota == topic)).astype(jnp.bfloat16)   # (N_TOTAL, TILE)

    # Block-diagonal gather: a single MXU RHS push fetches user+topic augmented rows.
    # hi/lo bf16 split of the f32 table -> ~f32 accuracy on the native bf16 MXU rate.
    g = jnp.dot(hi_ref[...], onehot, preferred_element_type=jnp.float32)       # (48, TILE)
    g = g + jnp.dot(lo_ref[...], onehot, preferred_element_type=jnp.float32)

    # Augmented dot product already contains user_bias + topic_bias + offset.
    score = jnp.sum(g[:AUG_PAD, :] * g[AUG_PAD:, :], axis=0, keepdims=True)    # (1, TILE)
    out_ref[...] = jax.nn.sigmoid(score) * 5.0                                  # lane-dense store


def _build_tables(user_emb, topic_emb, user_bias, topic_bias, offset):
    user_emb = user_emb.astype(jnp.float32)
    topic_emb = topic_emb.astype(jnp.float32)
    ub = (user_bias.astype(jnp.float32) + offset.astype(jnp.float32)[0]).reshape(-1, 1)
    tb = topic_bias.astype(jnp.float32).reshape(-1, 1)
    u_aug = jnp.concatenate(
        [user_emb, ub, jnp.ones((N_USERS, 1), jnp.float32),
         jnp.zeros((N_USERS, AUG_PAD - AUG_DIM), jnp.float32)], axis=1)        # (943, 24)
    t_aug = jnp.concatenate(
        [topic_emb, jnp.ones((N_TOPICS, 1), jnp.float32), tb,
         jnp.zeros((N_TOPICS, AUG_PAD - AUG_DIM), jnp.float32)], axis=1)       # (18, 24)

    # Block-diagonal combined table (2*AUG_PAD, N_TOTAL) = (48, 961).
    tab = jnp.zeros((2 * AUG_PAD, N_TOTAL), jnp.float32)
    tab = tab.at[:AUG_PAD, :N_USERS].set(u_aug.T)
    tab = tab.at[AUG_PAD:, N_USERS:].set(t_aug.T)

    hi = tab.astype(jnp.bfloat16)
    lo = (tab - hi.astype(jnp.float32)).astype(jnp.bfloat16)
    return hi, lo


def matrix_factorization_forward(data, user_emb, topic_emb, user_bias, topic_bias, offset,
                                 tile=None):
    """data: (B, 2) int rows of [user_id, topic_id]. Returns (B,) float32 ratings in [0, 5]."""
    B = data.shape[0]
    if tile is None:
        tile = _choose_tile(B)
    n_blocks = max(1, -(-B // tile))
    b_pad = n_blocks * tile

    # Pad batch to a multiple of the tile (index 0/0 is a valid dummy row), batch on lanes.
    data_i32 = data.astype(jnp.int32)
    data_pad = jnp.zeros((b_pad, 2), jnp.int32).at[:B, :].set(data_i32)
    data_t = data_pad.T                                            # (2, B_pad)

    hi, lo = _build_tables(user_emb, topic_emb, user_bias, topic_bias, offset)

    cost = pl.CostEstimate(
        flops=2 * 2 * b_pad * (2 * AUG_PAD) * N_TOTAL + 4 * b_pad * AUG_PAD,
        transcendentals=b_pad,
        bytes_accessed=hi.size * 2 + lo.size * 2 + data_t.size * 4 + b_pad * 4,
    )

    out = pl.pallas_call(
        mf_kernel,
        out_shape=jax.ShapeDtypeStruct((1, b_pad), jnp.float32),
        grid=(n_blocks,),
        in_specs=[
            pl.BlockSpec((2, tile), lambda i: (0, i)),                  # indices, tiled on batch
            pl.BlockSpec((2 * AUG_PAD, N_TOTAL), lambda i: (0, 0)),     # resident hi table
            pl.BlockSpec((2 * AUG_PAD, N_TOTAL), lambda i: (0, 0)),     # resident lo table
        ],
        out_specs=pl.BlockSpec((1, tile), lambda i: (0, i)),            # lane-dense output slab
        compiler_params=pltpu.CompilerParams(
            dimension_semantics=("parallel",),
            vmem_limit_bytes=16 * 1024 * 1024,
        ),
        cost_estimate=cost,
    )(data_t, hi, lo)

    return out[0, :B]


def reference_forward(data, user_emb, topic_emb, user_bias, topic_bias, offset):
    user = jnp.clip(data[:, 0], 0, N_USERS - 1)
    topic = jnp.clip(data[:, 1], 0, N_TOPICS - 1)
    ue = user_emb[user]
    te = topic_emb[topic]
    s = jnp.sum(ue * te, axis=1) + user_bias[user] + topic_bias[topic] + offset[0]
    return jax.nn.sigmoid(s) * 5.0


if __name__ == "__main__":
    key = jax.random.PRNGKey(0)
    k_u, k_t, k_d = jax.random.split(key, 3)

    # Deterministic parameter init (matches nn.Embedding(...).uniform_(0.0, 0.05), zero biases).
    user_emb = jax.random.uniform(k_u, (N_USERS, EMB_DIM), jnp.float32, 0.0, 0.05)
    topic_emb = jax.random.uniform(k_t, (N_TOPICS, EMB_DIM), jnp.float32, 0.0, 0.05)
    user_bias = jnp.zeros((N_USERS,), jnp.float32)
    topic_bias = jnp.zeros((N_TOPICS,), jnp.float32)
    offset = jnp.zeros((1,), jnp.float32)

    # Small batch of (user, topic) index pairs.
    B = 8
    users = jax.random.randint(k_d, (B,), 0, N_USERS, dtype=jnp.int32)
    topics = jax.random.randint(jax.random.fold_in(k_d, 1), (B,), 0, N_TOPICS, dtype=jnp.int32)
    data = jnp.stack([users, topics], axis=1)                      # (B, 2) int32

    out = matrix_factorization_forward(data, user_emb, topic_emb, user_bias, topic_bias, offset)
    out = jax.block_until_ready(out)

    ref = reference_forward(data, user_emb, topic_emb, user_bias, topic_bias, offset)
    assert out.shape == (B,)
    assert jnp.allclose(out, ref, atol=1e-5, rtol=1e-5)

    print("KERNEL_OK")
</pallas_src>

<mosaic_0001>
module attributes {stable_mosaic.version = 11 : i64} {
  func.func @mf_kernel(%arg0: i32, %arg1: memref<2x256xi32, #tpu.memory_space<vmem>>, %arg2: memref<48x961xbf16, #tpu.memory_space<vmem>>, %arg3: memref<48x961xbf16, #tpu.memory_space<vmem>>, %arg4: memref<1x256xf32, #tpu.memory_space<vmem>>) attributes {dimension_semantics = [#tpu.dimension_semantics<parallel>], iteration_bounds = array<i64: 1>, scalar_prefetch = 0 : i64, scratch_operands = 0 : i64, tpu.core_type = #tpu.core_type<tc>, window_params = [{transform_indices = @transform_0, window_bounds = array<i64: 2, 256>}, {pipeline_mode = #tpu.pipeline_mode<synchronous>, transform_indices = @transform_1, window_bounds = array<i64: 48, 961>}, {pipeline_mode = #tpu.pipeline_mode<synchronous>, transform_indices = @transform_2, window_bounds = array<i64: 48, 961>}, {transform_indices = @transform_3, window_bounds = array<i64: 1, 256>}]} {
    %c0 = arith.constant 0 : index
    %c0_0 = arith.constant 0 : index
    %0 = vector.load %arg1[%c0, %c0_0] : memref<2x256xi32, #tpu.memory_space<vmem>>, vector<2x256xi32>
    %1 = vector.extract_strided_slice %0 {offsets = [0, 0], sizes = [1, 256], strides = [1, 1]} : vector<2x256xi32> to vector<1x256xi32>
    %c0_i32 = arith.constant 0 : i32
    %c942_i32 = arith.constant 942 : i32
    %2 = vector.broadcast %c0_i32 : i32 to vector<1x256xi32>
    %3 = arith.maxsi %2, %1 : vector<1x256xi32>
    %4 = vector.broadcast %c942_i32 : i32 to vector<1x256xi32>
    %5 = arith.minsi %4, %3 : vector<1x256xi32>
    %6 = vector.extract_strided_slice %0 {offsets = [1, 0], sizes = [1, 256], strides = [1, 1]} : vector<2x256xi32> to vector<1x256xi32>
    %c0_i32_1 = arith.constant 0 : i32
    %c17_i32 = arith.constant 17 : i32
    %7 = vector.broadcast %c0_i32_1 : i32 to vector<1x256xi32>
    %8 = arith.maxsi %7, %6 : vector<1x256xi32>
    %9 = vector.broadcast %c17_i32 : i32 to vector<1x256xi32>
    %10 = arith.minsi %9, %8 : vector<1x256xi32>
    %c943_i32 = arith.constant 943 : i32
    %11 = vector.broadcast %c943_i32 : i32 to vector<1x256xi32>
    %12 = arith.addi %10, %11 : vector<1x256xi32>
    %13 = tpu.iota {dimensions = array<i32: 0>} : vector<961x256xi32>
    %14 = vector.broadcast %5 : vector<1x256xi32> to vector<961x256xi32>
    %15 = arith.cmpi eq, %13, %14 : vector<961x256xi32>
    %16 = vector.broadcast %12 : vector<1x256xi32> to vector<961x256xi32>
    %17 = arith.cmpi eq, %13, %16 : vector<961x256xi32>
    %18 = arith.ori %15, %17 : vector<961x256xi1>
    %19 = arith.extui %18 : vector<961x256xi1> to vector<961x256xi32>
    %20 = arith.sitofp %19 : vector<961x256xi32> to vector<961x256xf32>
    %21 = arith.truncf %20 : vector<961x256xf32> to vector<961x256xbf16>
    %c0_2 = arith.constant 0 : index
    %c0_3 = arith.constant 0 : index
    %22 = vector.load %arg2[%c0_2, %c0_3] : memref<48x961xbf16, #tpu.memory_space<vmem>>, vector<48x961xbf16>
    %cst = arith.constant dense<0.000000e+00> : vector<48x256xf32>
    %23 = tpu.matmul %22, %21, %cst {dimension_numbers = #tpu.dot_dimension_numbers<[1], [0], [0], [1], [0, 0, 1, 1], [], []>} : vector<48x961xbf16>, vector<961x256xbf16>, vector<48x256xf32> -> vector<48x256xf32>
    %c0_4 = arith.constant 0 : index
    %c0_5 = arith.constant 0 : index
    %24 = vector.load %arg3[%c0_4, %c0_5] : memref<48x961xbf16, #tpu.memory_space<vmem>>, vector<48x961xbf16>
    %cst_6 = arith.constant dense<0.000000e+00> : vector<48x256xf32>
    %25 = tpu.matmul %24, %21, %cst_6 {dimension_numbers = #tpu.dot_dimension_numbers<[1], [0], [0], [1], [0, 0, 1, 1], [], []>} : vector<48x961xbf16>, vector<961x256xbf16>, vector<48x256xf32> -> vector<48x256xf32>
    %26 = arith.addf %23, %25 : vector<48x256xf32>
    %27 = vector.extract_strided_slice %26 {offsets = [0, 0], sizes = [24, 256], strides = [1, 1]} : vector<48x256xf32> to vector<24x256xf32>
    %28 = vector.extract_strided_slice %26 {offsets = [24, 0], sizes = [24, 256], strides = [1, 1]} : vector<48x256xf32> to vector<24x256xf32>
    %29 = arith.mulf %27, %28 : vector<24x256xf32>
    %cst_7 = arith.constant dense<0.000000e+00> : vector<256xf32>
    %30 = vector.multi_reduction <add>, %29, %cst_7 [0] : vector<24x256xf32> to vector<256xf32>
    %31 = vector.shape_cast %30 : vector<256xf32> to vector<1x256xf32>
    %32 = arith.negf %31 : vector<1x256xf32>
    %33 = math.exp %32 : vector<1x256xf32>
    %cst_8 = arith.constant 1.000000e+00 : f32
    %34 = vector.broadcast %cst_8 : f32 to vector<1x256xf32>
    %35 = arith.addf %34, %33 : vector<1x256xf32>
    %36 = arith.divf %34, %35 : vector<1x256xf32>
    %cst_9 = arith.constant 5.000000e+00 : f32
    %37 = vector.broadcast %cst_9 : f32 to vector<1x256xf32>
    %38 = arith.mulf %36, %37 : vector<1x256xf32>
    %c0_10 = arith.constant 0 : index
    %c0_11 = arith.constant 0 : index
    %39 = vector.load %arg4[%c0_10, %c0_11] : memref<1x256xf32, #tpu.memory_space<vmem>>, vector<1x256xf32>
    tpu.vector_store %arg4[%c0_10, %c0_11], %38 {strides = array<i32>} : memref<1x256xf32, #tpu.memory_space<vmem>>, vector<1x256xf32>,
    return
  }
  func.func @transform_0(%arg0: i32) -> (i32, i32) {
    %c0_i32 = arith.constant 0 : i32
    %c0_i32_0 = arith.constant 0 : i32
    return %c0_i32, %arg0 : i32, i32
  }
  func.func @transform_1(%arg0: i32) -> (i32, i32) {
    %c0_i32 = arith.constant 0 : i32
    %c0_i32_0 = arith.constant 0 : i32
    %c0_i32_1 = arith.constant 0 : i32
    return %c0_i32, %c0_i32_0 : i32, i32
  }
  func.func @transform_2(%arg0: i32) -> (i32, i32) {
    %c0_i32 = arith.constant 0 : i32
    %c0_i32_0 = arith.constant 0 : i32
    %c0_i32_1 = arith.constant 0 : i32
    return %c0_i32, %c0_i32_0 : i32, i32
  }
  func.func @transform_3(%arg0: i32) -> (i32, i32) {
    %c0_i32 = arith.constant 0 : i32
    %c0_i32_0 = arith.constant 0 : i32
    return %c0_i32, %arg0 : i32, i32
  }
}

</mosaic_0001>

<llo_original>
// kernel: tpu_custom_call.1
$region0: #{tpu_custom_call.1}
  #allocation0 [shape = 'u32[]', space=smem, size = 0x4, offset = 0x4, fixed_abs, tag = 'smem constant byte address 0x4 - core index']
  #allocation1 [shape = 'u32[72,128]{1,0:T(1,128)}', space=vmem, size = 0x9000, scoped, tag = 'internal scratch']
  %s0 = inlined_call_operand.hbm [shape: s32[2,256], index: 0, kind: input, shape index: {}]
  %s1 = inlined_call_operand.hbm [shape: bf16[48,961], index: 1, kind: input, shape index: {}]
  %s2 = inlined_call_operand.hbm [shape: bf16[48,961], index: 2, kind: input, shape index: {}]
  %s3 = inlined_call_operand.hbm [shape: f32[1,256], index: 3, kind: output, shape index: {}]
  %s4 = sld [smem:[#allocation0]]
  $region34: #{tpu_custom_call.1} parent=0
    _
  %s6 = ssub.s32 1, %s4
  %s7 = scalar_select 0, %s6, %s4
  $region1: #{tpu_custom_call.1} parent=0
    #allocation2 [shape = 'u8[2048]{0}', space=vmem, size = 0x800, scoped, tag = 'input window, operand 0, single buffered']
    #allocation3 [shape = 's32[1]{0}', space=sflag, size = 0x4, scoped, tag = 'scoped memory for tpu_custom_call.1']
    #allocation4 [shape = 's32[1]{0}', space=sflag, size = 0x4, scoped, tag = 'scoped memory for tpu_custom_call.1']
    #allocation5 [shape = 'u8[98304]{0}', space=vmem, size = 0x18000, scoped, tag = 'input window, operand 1, single buffered']
    #allocation6 [shape = 's32[1]{0}', space=sflag, size = 0x4, scoped, tag = 'scoped memory for tpu_custom_call.1']
    #allocation7 [shape = 'u8[98304]{0}', space=vmem, size = 0x18000, scoped, tag = 'input window, operand 2, single buffered']
    #allocation8 [shape = 'u8[1024]{0}', space=vmem, size = 0x400, scoped, tag = 'output window, operand 0, single buffered']
    %8 = vsyncpa [#allocation3], 0
    %9 = vsyncpa [#allocation6], 0
    %10 = vsyncpa [#allocation4], 0
    // Predicated region
    $region2: #{tpu_custom_call.1} parent=1 // pred_check
      _
    $region3: #{tpu_custom_call.1} parent=1 // pred_check_branch
      %12 = sbr.rel (0) target = $region5
    $region4: #{tpu_custom_call.1} parent=1 // pred_region
      %14 = vsyncadd [#allocation3], 0
      %s16 = sshll.u32 %s0, 4
      %s17 = int_to_ptr.hbm [resolvable:$true] %s16
      %s18 = sshll.u32 [#allocation2], 4
      %s19 = int_to_ptr.vmem [resolvable:$true] %s18
      %21 = dma.hbm_to_vmem [thread:$0]  %s17, 64, %s19, [#allocation3]
    $region5: #{tpu_custom_call.1} parent=1 // pred_fallthru
      _
    // Predicated region
    $region6: #{tpu_custom_call.1} parent=1 // pred_check
      _
    $region7: #{tpu_custom_call.1} parent=1 // pred_check_branch
      %23 = sbr.rel (0) target = $region9
    $region8: #{tpu_custom_call.1} parent=1 // pred_region
      %25 = vsyncadd [#allocation6], 0
      %s26 = sshll.u32 %s1, 4
      %s27 = int_to_ptr.hbm [resolvable:$true] %s26
      %s28 = sshll.u32 [#allocation5], 4
      %s29 = int_to_ptr.vmem [resolvable:$true] %s28
      %34 = dma.hbm_to_vmem [thread:$0]  %s27, 3072, %s29, [#allocation6], 512, 512, 32
    $region9: #{tpu_custom_call.1} parent=1 // pred_fallthru
      _
    // Predicated region
    $region10: #{tpu_custom_call.1} parent=1 // pred_check
      _
    $region11: #{tpu_custom_call.1} parent=1 // pred_check_branch
      %36 = sbr.rel (0) target = $region13
    $region12: #{tpu_custom_call.1} parent=1 // pred_region
      %38 = vsyncadd [#allocation6], 0
      %s39 = sshll.u32 %s2, 4
      %s40 = int_to_ptr.hbm [resolvable:$true] %s39
      %s41 = sshll.u32 [#allocation7], 4
      %s42 = int_to_ptr.vmem [resolvable:$true] %s41
      %47 = dma.hbm_to_vmem [thread:$0]  %s40, 3072, %s42, [#allocation6], 512, 512, 32
    $region13: #{tpu_custom_call.1} parent=1 // pred_fallthru
      _
    // Predicated region
    $region14: #{tpu_custom_call.1} parent=1 // pred_check
      _
    $region15: #{tpu_custom_call.1} parent=1 // pred_check_branch
      %49 = sbr.rel (0) target = $region17
    $region16: #{tpu_custom_call.1} parent=1 // pred_region
      %51 = dma.done [#allocation3], 64
    $region17: #{tpu_custom_call.1} parent=1 // pred_fallthru
      _
    // Predicated region
    $region18: #{tpu_custom_call.1} parent=1 // pred_check
      _
    $region19: #{tpu_custom_call.1} parent=1 // pred_check_branch
      %53 = sbr.rel (0) target = $region21
    $region20: #{tpu_custom_call.1} parent=1 // pred_region
      %55 = dma.done [#allocation6], 3072
    $region21: #{tpu_custom_call.1} parent=1 // pred_fallthru
      _
    // Predicated region
    $region22: #{tpu_custom_call.1} parent=1 // pred_check
      _
    $region23: #{tpu_custom_call.1} parent=1 // pred_check_branch
      %57 = sbr.rel (0) target = $region25
    $region24: #{tpu_custom_call.1} parent=1 // pred_region
      %59 = dma.done [#allocation6], 3072
    $region25: #{tpu_custom_call.1} parent=1 // pred_fallthru
      _
    %v61 = vld [vmem:[#allocation2] sm:$0xf]
    %vm62 = vcmp.gt.s32.totalorder %v61, 0
    %v63 = vsel %vm62, %v61, 0
    %vm64 = vcmp.lt.s32.totalorder %v63, 942
    %v65 = vsel %vm64, %v63, 942
    %vm66 = vcmp.lt.s32.totalorder %v63, 17
    %v67 = vsel %vm66, %v63, 17
    %v68 = vadd.s32 %v67, 943
    %v69 = vlaneseq
    %v70 = vshrl.u32 %v69, 7
    %v71 = vadd.s32 %v70, 8
    %v72 = vadd.s32 %v70, 16
    %v73 = vadd.s32 %v70, 24
    %v74 = vadd.s32 %v70, 32
    %v75 = vadd.s32 %v70, 40
    %v76 = vadd.s32 %v70, 48
    %v77 = vadd.s32 %v70, 56
    %v78 = vadd.s32 %v70, 64
    %v79 = vadd.s32 %v70, 72
    %v80 = vadd.s32 %v70, 80
    %v81 = vadd.s32 %v70, 88
    %v82 = vadd.s32 %v70, 96
    %v83 = vadd.s32 %v70, 104
    %v84 = vadd.s32 %v70, 112
    %v85 = vadd.s32 %v70, 120
    %v86 = vadd.s32 %v70, 128
    %v87 = vadd.s32 %v70, 136
    %v88 = vadd.s32 %v70, 144
    %v89 = vadd.s32 %v70, 152
    %v90 = vadd.s32 %v70, 160
    %v91 = vadd.s32 %v70, 168
    %v92 = vadd.s32 %v70, 176
    %v93 = vadd.s32 %v70, 184
    %v94 = vadd.s32 %v70, 192
    %v95 = vadd.s32 %v70, 200
    %v96 = vadd.s32 %v70, 208
    %v97 = vadd.s32 %v70, 216
    %v98 = vadd.s32 %v70, 224
    %v99 = vadd.s32 %v70, 232
    %v100 = vadd.s32 %v70, 240
    %v101 = vadd.s32 %v70, 248
    %v102 = vadd.s32 %v70, 256
    %v103 = vadd.s32 %v70, 264
    %v104 = vadd.s32 %v70, 272
    %v105 = vadd.s32 %v70, 280
    %v106 = vadd.s32 %v70, 288
    %v107 = vadd.s32 %v70, 296
    %v108 = vadd.s32 %v70, 304
    %v109 = vadd.s32 %v70, 312
    %v110 = vadd.s32 %v70, 320
    %v111 = vadd.s32 %v70, 328
    %v112 = vadd.s32 %v70, 336
    %v113 = vadd.s32 %v70, 344
    %v114 = vadd.s32 %v70, 352
    %v115 = vadd.s32 %v70, 360
    %v116 = vadd.s32 %v70, 368
    %v117 = vadd.s32 %v70, 376
    %v118 = vadd.s32 %v70, 384
    %v119 = vadd.s32 %v70, 392
    %v120 = vadd.s32 %v70, 400
    %v121 = vadd.s32 %v70, 408
    %v122 = vadd.s32 %v70, 416
    %v123 = vadd.s32 %v70, 424
    %v124 = vadd.s32 %v70, 432
    %v125 = vadd.s32 %v70, 440
    %v126 = vadd.s32 %v70, 448
    %v127 = vadd.s32 %v70, 456
    %v128 = vadd.s32 %v70, 464
    %v129 = vadd.s32 %v70, 472
    %v130 = vadd.s32 %v70, 480
    %v131 = vadd.s32 %v70, 488
    %v132 = vadd.s32 %v70, 496
    %v133 = vadd.s32 %v70, 504
    %v134 = vadd.s32 %v70, 512
    %v135 = vadd.s32 %v70, 520
    %v136 = vadd.s32 %v70, 528
    %v137 = vadd.s32 %v70, 536
    %v138 = vadd.s32 %v70, 544
    %v139 = vadd.s32 %v70, 552
    %v140 = vadd.s32 %v70, 560
    %v141 = vadd.s32 %v70, 568
    %v142 = vadd.s32 %v70, 576
    %v143 = vadd.s32 %v70, 584
    %v144 = vadd.s32 %v70, 592
    %v145 = vadd.s32 %v70, 600
    %v146 = vadd.s32 %v70, 608
    %v147 = vadd.s32 %v70, 616
    %v148 = vadd.s32 %v70, 624
    %v149 = vadd.s32 %v70, 632
    %v150 = vadd.s32 %v70, 640
    %v151 = vadd.s32 %v70, 648
    %v152 = vadd.s32 %v70, 656
    %v153 = vadd.s32 %v70, 664
    %v154 = vadd.s32 %v70, 672
    %v155 = vadd.s32 %v70, 680
    %v156 = vadd.s32 %v70, 688
    %v157 = vadd.s32 %v70, 696
    %v158 = vadd.s32 %v70, 704
    %v159 = vadd.s32 %v70, 712
    %v160 = vadd.s32 %v70, 720
    %v161 = vadd.s32 %v70, 728
    %v162 = vadd.s32 %v70, 736
    %v163 = vadd.s32 %v70, 744
    %v164 = vadd.s32 %v70, 752
    %v165 = vadd.s32 %v70, 760
    %v166 = vadd.s32 %v70, 768
    %v167 = vadd.s32 %v70, 776
    %v168 = vadd.s32 %v70, 784
    %v169 = vadd.s32 %v70, 792
    %v170 = vadd.s32 %v70, 800
    %v171 = vadd.s32 %v70, 808
    %v172 = vadd.s32 %v70, 816
    %v173 = vadd.s32 %v70, 824
    %v174 = vadd.s32 %v70, 832
    %v175 = vadd.s32 %v70, 840
    %v176 = vadd.s32 %v70, 848
    %v177 = vadd.s32 %v70, 856
    %v178 = vadd.s32 %v70, 864
    %v179 = vadd.s32 %v70, 872
    %v180 = vadd.s32 %v70, 880
    %v181 = vadd.s32 %v70, 888
    %v182 = vadd.s32 %v70, 896
    %v183 = vadd.s32 %v70, 904
    %v184 = vadd.s32 %v70, 912
    %v185 = vadd.s32 %v70, 920
    %v186 = vadd.s32 %v70, 928
    %v187 = vadd.s32 %v70, 936
    %v188 = vadd.s32 %v70, 944
    %v189 = vadd.s32 %v70, 952
    %v190 = vadd.s32 %v70, 960
    %v191 = vperm.slane %v65, 0
    %v192 = vperm.slane %v65, 2
    %v193 = vperm.slane %v191, 0
    %v194 = vperm.slane %v192, 0
    %vm195 = vcmp.eq.s32.totalorder %v70, %v193
    %vm196 = vcmp.eq.s32.totalorder %v70, %v194
    %vm197 = vcmp.eq.s32.totalorder %v71, %v193
    %vm198 = vcmp.eq.s32.totalorder %v71, %v194
    %vm199 = vcmp.eq.s32.totalorder %v72, %v193
    %vm200 = vcmp.eq.s32.totalorder %v72, %v194
    %vm201 = vcmp.eq.s32.totalorder %v73, %v193
    %vm202 = vcmp.eq.s32.totalorder %v73, %v194
    %vm203 = vcmp.eq.s32.totalorder %v74, %v193
    %vm204 = vcmp.eq.s32.totalorder %v74, %v194
    %vm205 = vcmp.eq.s32.totalorder %v75, %v193
    %vm206 = vcmp.eq.s32.totalorder %v75, %v194
    %vm207 = vcmp.eq.s32.totalorder %v76, %v193
    %vm208 = vcmp.eq.s32.totalorder %v76, %v194
    %vm209 = vcmp.eq.s32.totalorder %v77, %v193
    %vm210 = vcmp.eq.s32.totalorder %v77, %v194
    %vm211 = vcmp.eq.s32.totalorder %v78, %v193
    %vm212 = vcmp.eq.s32.totalorder %v78, %v194
    %vm213 = vcmp.eq.s32.totalorder %v79, %v193
    %vm214 = vcmp.eq.s32.totalorder %v79, %v194
    %vm215 = vcmp.eq.s32.totalorder %v80, %v193
    %vm216 = vcmp.eq.s32.totalorder %v80, %v194
    %vm217 = vcmp.eq.s32.totalorder %v81, %v193
    %vm218 = vcmp.eq.s32.totalorder %v81, %v194
    %vm219 = vcmp.eq.s32.totalorder %v82, %v193
    %vm220 = vcmp.eq.s32.totalorder %v82, %v194
    %vm221 = vcmp.eq.s32.totalorder %v83, %v193
    %vm222 = vcmp.eq.s32.totalorder %v83, %v194
    %vm223 = vcmp.eq.s32.totalorder %v84, %v193
    %vm224 = vcmp.eq.s32.totalorder %v84, %v194
    %vm225 = vcmp.eq.s32.totalorder %v85, %v193
    %vm226 = vcmp.eq.s32.totalorder %v85, %v194
    %vm227 = vcmp.eq.s32.totalorder %v86, %v193
    %vm228 = vcmp.eq.s32.totalorder %v86, %v194
    %vm229 = vcmp.eq.s32.totalorder %v87, %v193
    %vm230 = vcmp.eq.s32.totalorder %v87, %v194
    %vm231 = vcmp.eq.s32.totalorder %v88, %v193
    %vm232 = vcmp.eq.s32.totalorder %v88, %v194
    %vm233 = vcmp.eq.s32.totalorder %v89, %v193
    %vm234 = vcmp.eq.s32.totalorder %v89, %v194
    %vm235 = vcmp.eq.s32.totalorder %v90, %v193
    %vm236 = vcmp.eq.s32.totalorder %v90, %v194
    %vm237 = vcmp.eq.s32.totalorder %v91, %v193
    %vm238 = vcmp.eq.s32.totalorder %v91, %v194
    %vm239 = vcmp.eq.s32.totalorder %v92, %v193
    %vm240 = vcmp.eq.s32.totalorder %v92, %v194
    %vm241 = vcmp.eq.s32.totalorder %v93, %v193
    %vm242 = vcmp.eq.s32.totalorder %v93, %v194
    %vm243 = vcmp.eq.s32.totalorder %v94, %v193
    %vm244 = vcmp.eq.s32.totalorder %v94, %v194
    %vm245 = vcmp.eq.s32.totalorder %v95, %v193
    %vm246 = vcmp.eq.s32.totalorder %v95, %v194
    %vm247 = vcmp.eq.s32.totalorder %v96, %v193
    %vm248 = vcmp.eq.s32.totalorder %v96, %v194
    %vm249 = vcmp.eq.s32.totalorder %v97, %v193
    %vm250 = vcmp.eq.s32.totalorder %v97, %v194
    %vm251 = vcmp.eq.s32.totalorder %v98, %v193
    %vm252 = vcmp.eq.s32.totalorder %v98, %v194
    %vm253 = vcmp.eq.s32.totalorder %v99, %v193
    %vm254 = vcmp.eq.s32.totalorder %v99, %v194
    %vm255 = vcmp.eq.s32.totalorder %v100, %v193
    %vm256 = vcmp.eq.s32.totalorder %v100, %v194
    %vm257 = vcmp.eq.s32.totalorder %v101, %v193
    %vm258 = vcmp.eq.s32.totalorder %v101, %v194
    %vm259 = vcmp.eq.s32.totalorder %v102, %v193
    %vm260 = vcmp.eq.s32.totalorder %v102, %v194
    %vm261 = vcmp.eq.s32.totalorder %v103, %v193
    %vm262 = vcmp.eq.s32.totalorder %v103, %v194
    %vm263 = vcmp.eq.s32.totalorder %v104, %v193
    %vm264 = vcmp.eq.s32.totalorder %v104, %v194
    %vm265 = vcmp.eq.s32.totalorder %v105, %v193
    %vm266 = vcmp.eq.s32.totalorder %v105, %v194
    %vm267 = vcmp.eq.s32.totalorder %v106, %v193
    %vm268 = vcmp.eq.s32.totalorder %v106, %v194
    %vm269 = vcmp.eq.s32.totalorder %v107, %v193
    %vm270 = vcmp.eq.s32.totalorder %v107, %v194
    %vm271 = vcmp.eq.s32.totalorder %v108, %v193
    %vm272 = vcmp.eq.s32.totalorder %v108, %v194
    %vm273 = vcmp.eq.s32.totalorder %v109, %v193
    %vm274 = vcmp.eq.s32.totalorder %v109, %v194
    %vm275 = vcmp.eq.s32.totalorder %v110, %v193
    %vm276 = vcmp.eq.s32.totalorder %v110, %v194
    %vm277 = vcmp.eq.s32.totalorder %v111, %v193
    %vm278 = vcmp.eq.s32.totalorder %v111, %v194
    %vm279 = vcmp.eq.s32.totalorder %v112, %v193
    %vm280 = vcmp.eq.s32.totalorder %v112, %v194
    %vm281 = vcmp.eq.s32.totalorder %v113, %v193
    %vm282 = vcmp.eq.s32.totalorder %v113, %v194
    %vm283 = vcmp.eq.s32.totalorder %v114, %v193
    %vm284 = vcmp.eq.s32.totalorder %v114, %v194
    %vm285 = vcmp.eq.s32.totalorder %v115, %v193
    %vm286 = vcmp.eq.s32.totalorder %v115, %v194
    %vm287 = vcmp.eq.s32.totalorder %v116, %v193
    %vm288 = vcmp.eq.s32.totalorder %v116, %v194
    %vm289 = vcmp.eq.s32.totalorder %v117, %v193
    %vm290 = vcmp.eq.s32.totalorder %v117, %v194
    %vm291 = vcmp.eq.s32.totalorder %v118, %v193
    %vm292 = vcmp.eq.s32.totalorder %v118, %v194
    %vm293 = vcmp.eq.s32.totalorder %v119, %v193
    %vm294 = vcmp.eq.s32.totalorder %v119, %v194
    %vm295 = vcmp.eq.s32.totalorder %v120, %v193
    %vm296 = vcmp.eq.s32.totalorder %v120, %v194
    %vm297 = vcmp.eq.s32.totalorder %v121, %v193
    %vm298 = vcmp.eq.s32.totalorder %v121, %v194
    %vm299 = vcmp.eq.s32.totalorder %v122, %v193
    %vm300 = vcmp.eq.s32.totalorder %v122, %v194
    %vm301 = vcmp.eq.s32.totalorder %v123, %v193
    %vm302 = vcmp.eq.s32.totalorder %v123, %v194
    %vm303 = vcmp.eq.s32.totalorder %v124, %v193
    %vm304 = vcmp.eq.s32.totalorder %v124, %v194
    %vm305 = vcmp.eq.s32.totalorder %v125, %v193
    %vm306 = vcmp.eq.s32.totalorder %v125, %v194
    %vm307 = vcmp.eq.s32.totalorder %v126, %v193
    %vm308 = vcmp.eq.s32.totalorder %v126, %v194
    %vm309 = vcmp.eq.s32.totalorder %v127, %v193
    %vm310 = vcmp.eq.s32.totalorder %v127, %v194
    %vm311 = vcmp.eq.s32.totalorder %v128, %v193
    %vm312 = vcmp.eq.s32.totalorder %v128, %v194
    %vm313 = vcmp.eq.s32.totalorder %v129, %v193
    %vm314 = vcmp.eq.s32.totalorder %v129, %v194
    %vm315 = vcmp.eq.s32.totalorder %v130, %v193
    %vm316 = vcmp.eq.s32.totalorder %v130, %v194
    %vm317 = vcmp.eq.s32.totalorder %v131, %v193
    %vm318 = vcmp.eq.s32.totalorder %v131, %v194
    %vm319 = vcmp.eq.s32.totalorder %v132, %v193
    %vm320 = vcmp.eq.s32.totalorder %v132, %v194
    %vm321 = vcmp.eq.s32.totalorder %v133, %v193
    %vm322 = vcmp.eq.s32.totalorder %v133, %v194
    %vm323 = vcmp.eq.s32.totalorder %v134, %v193
    %vm324 = vcmp.eq.s32.totalorder %v134, %v194
    %vm325 = vcmp.eq.s32.totalorder %v135, %v193
    %vm326 = vcmp.eq.s32.totalorder %v135, %v194
    %vm327 = vcmp.eq.s32.totalorder %v136, %v193
    %vm328 = vcmp.eq.s32.totalorder %v136, %v194
    %vm329 = vcmp.eq.s32.totalorder %v137, %v193
    %vm330 = vcmp.eq.s32.totalorder %v137, %v194
    %vm331 = vcmp.eq.s32.totalorder %v138, %v193
    %vm332 = vcmp.eq.s32.totalorder %v138, %v194
    %vm333 = vcmp.eq.s32.totalorder %v139, %v193
    %vm334 = vcmp.eq.s32.totalorder %v139, %v194
    %vm335 = vcmp.eq.s32.totalorder %v140, %v193
    %vm336 = vcmp.eq.s32.totalorder %v140, %v194
    %vm337 = vcmp.eq.s32.totalorder %v141, %v193
    %vm338 = vcmp.eq.s32.totalorder %v141, %v194
    %vm339 = vcmp.eq.s32.totalorder %v142, %v193
    %vm340 = vcmp.eq.s32.totalorder %v142, %v194
    %vm341 = vcmp.eq.s32.totalorder %v143, %v193
    %vm342 = vcmp.eq.s32.totalorder %v143, %v194
    %vm343 = vcmp.eq.s32.totalorder %v144, %v193
    %vm344 = vcmp.eq.s32.totalorder %v144, %v194
    %vm345 = vcmp.eq.s32.totalorder %v145, %v193
    %vm346 = vcmp.eq.s32.totalorder %v145, %v194
    %vm347 = vcmp.eq.s32.totalorder %v146, %v193
    %vm348 = vcmp.eq.s32.totalorder %v146, %v194
    %vm349 = vcmp.eq.s32.totalorder %v147, %v193
    %vm350 = vcmp.eq.s32.totalorder %v147, %v194
    %vm351 = vcmp.eq.s32.totalorder %v148, %v193
    %vm352 = vcmp.eq.s32.totalorder %v148, %v194
    %vm353 = vcmp.eq.s32.totalorder %v149, %v193
    %vm354 = vcmp.eq.s32.totalorder %v149, %v194
    %vm355 = vcmp.eq.s32.totalorder %v150, %v193
    %vm356 = vcmp.eq.s32.totalorder %v150, %v194
    %vm357 = vcmp.eq.s32.totalorder %v151, %v193
    %vm358 = vcmp.eq.s32.totalorder %v151, %v194
    %vm359 = vcmp.eq.s32.totalorder %v152, %v193
    %vm360 = vcmp.eq.s32.totalorder %v152, %v194
    %vm361 = vcmp.eq.s32.totalorder %v153, %v193
    %vm362 = vcmp.eq.s32.totalorder %v153, %v194
    %vm363 = vcmp.eq.s32.totalorder %v154, %v193
    %vm364 = vcmp.eq.s32.totalorder %v154, %v194
    %vm365 = vcmp.eq.s32.totalorder %v155, %v193
    %vm366 = vcmp.eq.s32.totalorder %v155, %v194
    %vm367 = vcmp.eq.s32.totalorder %v156, %v193
    %vm368 = vcmp.eq.s32.totalorder %v156, %v194
    %vm369 = vcmp.eq.s32.totalorder %v157, %v193
    %vm370 = vcmp.eq.s32.totalorder %v157, %v194
    %vm371 = vcmp.eq.s32.totalorder %v158, %v193
    %vm372 = vcmp.eq.s32.totalorder %v158, %v194
    %vm373 = vcmp.eq.s32.totalorder %v159, %v193
    %vm374 = vcmp.eq.s32.totalorder %v159, %v194
    %vm375 = vcmp.eq.s32.totalorder %v160, %v193
    %vm376 = vcmp.eq.s32.totalorder %v160, %v194
    %vm377 = vcmp.eq.s32.totalorder %v161, %v193
    %vm378 = vcmp.eq.s32.totalorder %v161, %v194
    %vm379 = vcmp.eq.s32.totalorder %v162, %v193
    %vm380 = vcmp.eq.s32.totalorder %v162, %v194
    %vm381 = vcmp.eq.s32.totalorder %v163, %v193
    %vm382 = vcmp.eq.s32.totalorder %v163, %v194
    %vm383 = vcmp.eq.s32.totalorder %v164, %v193
    %vm384 = vcmp.eq.s32.totalorder %v164, %v194
    %vm385 = vcmp.eq.s32.totalorder %v165, %v193
    %vm386 = vcmp.eq.s32.totalorder %v165, %v194
    %vm387 = vcmp.eq.s32.totalorder %v166, %v193
    %vm388 = vcmp.eq.s32.totalorder %v166, %v194
    %vm389 = vcmp.eq.s32.totalorder %v167, %v193
    %vm390 = vcmp.eq.s32.totalorder %v167, %v194
    %vm391 = vcmp.eq.s32.totalorder %v168, %v193
    %vm392 = vcmp.eq.s32.totalorder %v168, %v194
    %vm393 = vcmp.eq.s32.totalorder %v169, %v193
    %vm394 = vcmp.eq.s32.totalorder %v169, %v194
    %vm395 = vcmp.eq.s32.totalorder %v170, %v193
    %vm396 = vcmp.eq.s32.totalorder %v170, %v194
    %vm397 = vcmp.eq.s32.totalorder %v171, %v193
    %vm398 = vcmp.eq.s32.totalorder %v171, %v194
    %vm399 = vcmp.eq.s32.totalorder %v172, %v193
    %vm400 = vcmp.eq.s32.totalorder %v172, %v194
    %vm401 = vcmp.eq.s32.totalorder %v173, %v193
    %vm402 = vcmp.eq.s32.totalorder %v173, %v194
    %vm403 = vcmp.eq.s32.totalorder %v174, %v193
    %vm404 = vcmp.eq.s32.totalorder %v174, %v194
    %vm405 = vcmp.eq.s32.totalorder %v175, %v193
    %vm406 = vcmp.eq.s32.totalorder %v175, %v194
    %vm407 = vcmp.eq.s32.totalorder %v176, %v193
    %vm408 = vcmp.eq.s32.totalorder %v176, %v194
    %vm409 = vcmp.eq.s32.totalorder %v177, %v193
    %vm410 = vcmp.eq.s32.totalorder %v177, %v194
    %vm411 = vcmp.eq.s32.totalorder %v178, %v193
    %vm412 = vcmp.eq.s32.totalorder %v178, %v194
    %vm413 = vcmp.eq.s32.totalorder %v179, %v193
    %vm414 = vcmp.eq.s32.totalorder %v179, %v194
    %vm415 = vcmp.eq.s32.totalorder %v180, %v193
    %vm416 = vcmp.eq.s32.totalorder %v180, %v194
    %vm417 = vcmp.eq.s32.totalorder %v181, %v193
    %vm418 = vcmp.eq.s32.totalorder %v181, %v194
    %vm419 = vcmp.eq.s32.totalorder %v182, %v193
    %vm420 = vcmp.eq.s32.totalorder %v182, %v194
    %vm421 = vcmp.eq.s32.totalorder %v183, %v193
    %vm422 = vcmp.eq.s32.totalorder %v183, %v194
    %vm423 = vcmp.eq.s32.totalorder %v184, %v193
    %vm424 = vcmp.eq.s32.totalorder %v184, %v194
    %vm425 = vcmp.eq.s32.totalorder %v185, %v193
    %vm426 = vcmp.eq.s32.totalorder %v185, %v194
    %vm427 = vcmp.eq.s32.totalorder %v186, %v193
    %vm428 = vcmp.eq.s32.totalorder %v186, %v194
    %vm429 = vcmp.eq.s32.totalorder %v187, %v193
    %vm430 = vcmp.eq.s32.totalorder %v187, %v194
    %vm431 = vcmp.eq.s32.totalorder %v188, %v193
    %vm432 = vcmp.eq.s32.totalorder %v188, %v194
    %vm433 = vcmp.eq.s32.totalorder %v189, %v193
    %vm434 = vcmp.eq.s32.totalorder %v189, %v194
    %vm435 = vcmp.eq.s32.totalorder %v190, %v193
    %vm436 = vcmp.eq.s32.totalorder %v190, %v194
    %v437 = vperm.slane %v68, 1
    %v438 = vperm.slane %v68, 3
    %v439 = vperm.slane %v437, 1
    %v440 = vperm.slane %v438, 1
    %vm441 = vcmp.eq.s32.totalorder %v70, %v439
    %vm442 = vcmp.eq.s32.totalorder %v70, %v440
    %vm443 = vcmp.eq.s32.totalorder %v71, %v439
    %vm444 = vcmp.eq.s32.totalorder %v71, %v440
    %vm445 = vcmp.eq.s32.totalorder %v72, %v439
    %vm446 = vcmp.eq.s32.totalorder %v72, %v440
    %vm447 = vcmp.eq.s32.totalorder %v73, %v439
    %vm448 = vcmp.eq.s32.totalorder %v73, %v440
    %vm449 = vcmp.eq.s32.totalorder %v74, %v439
    %vm450 = vcmp.eq.s32.totalorder %v74, %v440
    %vm451 = vcmp.eq.s32.totalorder %v75, %v439
    %vm452 = vcmp.eq.s32.totalorder %v75, %v440
    %vm453 = vcmp.eq.s32.totalorder %v76, %v439
    %vm454 = vcmp.eq.s32.totalorder %v76, %v440
    %vm455 = vcmp.eq.s32.totalorder %v77, %v439
    %vm456 = vcmp.eq.s32.totalorder %v77, %v440
    %vm457 = vcmp.eq.s32.totalorder %v78, %v439
    %vm458 = vcmp.eq.s32.totalorder %v78, %v440
    %vm459 = vcmp.eq.s32.totalorder %v79, %v439
    %vm460 = vcmp.eq.s32.totalorder %v79, %v440
    %vm461 = vcmp.eq.s32.totalorder %v80, %v439
    %vm462 = vcmp.eq.s32.totalorder %v80, %v440
    %vm463 = vcmp.eq.s32.totalorder %v81, %v439
    %vm464 = vcmp.eq.s32.totalorder %v81, %v440
    %vm465 = vcmp.eq.s32.totalorder %v82, %v439
    %vm466 = vcmp.eq.s32.totalorder %v82, %v440
    %vm467 = vcmp.eq.s32.totalorder %v83, %v439
    %vm468 = vcmp.eq.s32.totalorder %v83, %v440
    %vm469 = vcmp.eq.s32.totalorder %v84, %v439
    %vm470 = vcmp.eq.s32.totalorder %v84, %v440
    %vm471 = vcmp.eq.s32.totalorder %v85, %v439
    %vm472 = vcmp.eq.s32.totalorder %v85, %v440
    %vm473 = vcmp.eq.s32.totalorder %v86, %v439
    %vm474 = vcmp.eq.s32.totalorder %v86, %v440
    %vm475 = vcmp.eq.s32.totalorder %v87, %v439
    %vm476 = vcmp.eq.s32.totalorder %v87, %v440
    %vm477 = vcmp.eq.s32.totalorder %v88, %v439
    %vm478 = vcmp.eq.s32.totalorder %v88, %v440
    %vm479 = vcmp.eq.s32.totalorder %v89, %v439
    %vm480 = vcmp.eq.s32.totalorder %v89, %v440
    %vm481 = vcmp.eq.s32.totalorder %v90, %v439
    %vm482 = vcmp.eq.s32.totalorder %v90, %v440
    %vm483 = vcmp.eq.s32.totalorder %v91, %v439
    %vm484 = vcmp.eq.s32.totalorder %v91, %v440
    %vm485 = vcmp.eq.s32.totalorder %v92, %v439
    %vm486 = vcmp.eq.s32.totalorder %v92, %v440
    %vm487 = vcmp.eq.s32.totalorder %v93, %v439
    %vm488 = vcmp.eq.s32.totalorder %v93, %v440
    %vm489 = vcmp.eq.s32.totalorder %v94, %v439
    %vm490 = vcmp.eq.s32.totalorder %v94, %v440
    %vm491 = vcmp.eq.s32.totalorder %v95, %v439
    %vm492 = vcmp.eq.s32.totalorder %v95, %v440
    %vm493 = vcmp.eq.s32.totalorder %v96, %v439
    %vm494 = vcmp.eq.s32.totalorder %v96, %v440
    %vm495 = vcmp.eq.s32.totalorder %v97, %v439
    %vm496 = vcmp.eq.s32.totalorder %v97, %v440
    %vm497 = vcmp.eq.s32.totalorder %v98, %v439
    %vm498 = vcmp.eq.s32.totalorder %v98, %v440
    %vm499 = vcmp.eq.s32.totalorder %v99, %v439
    %vm500 = vcmp.eq.s32.totalorder %v99, %v440
    %vm501 = vcmp.eq.s32.totalorder %v100, %v439
    %vm502 = vcmp.eq.s32.totalorder %v100, %v440
    %vm503 = vcmp.eq.s32.totalorder %v101, %v439
    %vm504 = vcmp.eq.s32.totalorder %v101, %v440
    %vm505 = vcmp.eq.s32.totalorder %v102, %v439
    %vm506 = vcmp.eq.s32.totalorder %v102, %v440
    %vm507 = vcmp.eq.s32.totalorder %v103, %v439
    %vm508 = vcmp.eq.s32.totalorder %v103, %v440
    %vm509 = vcmp.eq.s32.totalorder %v104, %v439
    %vm510 = vcmp.eq.s32.totalorder %v104, %v440
    %vm511 = vcmp.eq.s32.totalorder %v105, %v439
    %vm512 = vcmp.eq.s32.totalorder %v105, %v440
    %vm513 = vcmp.eq.s32.totalorder %v106, %v439
    %vm514 = vcmp.eq.s32.totalorder %v106, %v440
    %vm515 = vcmp.eq.s32.totalorder %v107, %v439
    %vm516 = vcmp.eq.s32.totalorder %v107, %v440
    %vm517 = vcmp.eq.s32.totalorder %v108, %v439
    %vm518 = vcmp.eq.s32.totalorder %v108, %v440
    %vm519 = vcmp.eq.s32.totalorder %v109, %v439
    %vm520 = vcmp.eq.s32.totalorder %v109, %v440
    %vm521 = vcmp.eq.s32.totalorder %v110, %v439
    %vm522 = vcmp.eq.s32.totalorder %v110, %v440
    %vm523 = vcmp.eq.s32.totalorder %v111, %v439
    %vm524 = vcmp.eq.s32.totalorder %v111, %v440
    %vm525 = vcmp.eq.s32.totalorder %v112, %v439
    %vm526 = vcmp.eq.s32.totalorder %v112, %v440
    %vm527 = vcmp.eq.s32.totalorder %v113, %v439
    %vm528 = vcmp.eq.s32.totalorder %v113, %v440
    %vm529 = vcmp.eq.s32.totalorder %v114, %v439
    %vm530 = vcmp.eq.s32.totalorder %v114, %v440
    %vm531 = vcmp.eq.s32.totalorder %v115, %v439
    %vm532 = vcmp.eq.s32.totalorder %v115, %v440
    %vm533 = vcmp.eq.s32.totalorder %v116, %v439
    %vm534 = vcmp.eq.s32.totalorder %v116, %v440
    %vm535 = vcmp.eq.s32.totalorder %v117, %v439
    %vm536 = vcmp.eq.s32.totalorder %v117, %v440
    %vm537 = vcmp.eq.s32.totalorder %v118, %v439
    %vm538 = vcmp.eq.s32.totalorder %v118, %v440
    %vm539 = vcmp.eq.s32.totalorder %v119, %v439
    %vm540 = vcmp.eq.s32.totalorder %v119, %v440
    %vm541 = vcmp.eq.s32.totalorder %v120, %v439
    %vm542 = vcmp.eq.s32.totalorder %v120, %v440
    %vm543 = vcmp.eq.s32.totalorder %v121, %v439
    %vm544 = vcmp.eq.s32.totalorder %v121, %v440
    %vm545 = vcmp.eq.s32.totalorder %v122, %v439
    %vm546 = vcmp.eq.s32.totalorder %v122, %v440
    %vm547 = vcmp.eq.s32.totalorder %v123, %v439
    %vm548 = vcmp.eq.s32.totalorder %v123, %v440
    %vm549 = vcmp.eq.s32.totalorder %v124, %v439
    %vm550 = vcmp.eq.s32.totalorder %v124, %v440
    %vm551 = vcmp.eq.s32.totalorder %v125, %v439
    %vm552 = vcmp.eq.s32.totalorder %v125, %v440
    %vm553 = vcmp.eq.s32.totalorder %v126, %v439
    %vm554 = vcmp.eq.s32.totalorder %v126, %v440
    %vm555 = vcmp.eq.s32.totalorder %v127, %v439
    %vm556 = vcmp.eq.s32.totalorder %v127, %v440
    %vm557 = vcmp.eq.s32.totalorder %v128, %v439
    %vm558 = vcmp.eq.s32.totalorder %v128, %v440
    %vm559 = vcmp.eq.s32.totalorder %v129, %v439
    %vm560 = vcmp.eq.s32.totalorder %v129, %v440
    %vm561 = vcmp.eq.s32.totalorder %v130, %v439
    %vm562 = vcmp.eq.s32.totalorder %v130, %v440
    %vm563 = vcmp.eq.s32.totalorder %v131, %v439
    %vm564 = vcmp.eq.s32.totalorder %v131, %v440
    %vm565 = vcmp.eq.s32.totalorder %v132, %v439
    %vm566 = vcmp.eq.s32.totalorder %v132, %v440
    %vm567 = vcmp.eq.s32.totalorder %v133, %v439
    %vm568 = vcmp.eq.s32.totalorder %v133, %v440
    %vm569 = vcmp.eq.s32.totalorder %v134, %v439
    %vm570 = vcmp.eq.s32.totalorder %v134, %v440
    %vm571 = vcmp.eq.s32.totalorder %v135, %v439
    %vm572 = vcmp.eq.s32.totalorder %v135, %v440
    %vm573 = vcmp.eq.s32.totalorder %v136, %v439
    %vm574 = vcmp.eq.s32.totalorder %v136, %v440
    %vm575 = vcmp.eq.s32.totalorder %v137, %v439
    %vm576 = vcmp.eq.s32.totalorder %v137, %v440
    %vm577 = vcmp.eq.s32.totalorder %v138, %v439
    %vm578 = vcmp.eq.s32.totalorder %v138, %v440
    %vm579 = vcmp.eq.s32.totalorder %v139, %v439
    %vm580 = vcmp.eq.s32.totalorder %v139, %v440
    %vm581 = vcmp.eq.s32.totalorder %v140, %v439
    %vm582 = vcmp.eq.s32.totalorder %v140, %v440
    %vm583 = vcmp.eq.s32.totalorder %v141, %v439
    %vm584 = vcmp.eq.s32.totalorder %v141, %v440
    %vm585 = vcmp.eq.s32.totalorder %v142, %v439
    %vm586 = vcmp.eq.s32.totalorder %v142, %v440
    %vm587 = vcmp.eq.s32.totalorder %v143, %v439
    %vm588 = vcmp.eq.s32.totalorder %v143, %v440
    %vm589 = vcmp.eq.s32.totalorder %v144, %v439
    %vm590 = vcmp.eq.s32.totalorder %v144, %v440
    %vm591 = vcmp.eq.s32.totalorder %v145, %v439
    %vm592 = vcmp.eq.s32.totalorder %v145, %v440
    %vm593 = vcmp.eq.s32.totalorder %v146, %v439
    %vm594 = vcmp.eq.s32.totalorder %v146, %v440
    %vm595 = vcmp.eq.s32.totalorder %v147, %v439
    %vm596 = vcmp.eq.s32.totalorder %v147, %v440
    %vm597 = vcmp.eq.s32.totalorder %v148, %v439
    %vm598 = vcmp.eq.s32.totalorder %v148, %v440
    %vm599 = vcmp.eq.s32.totalorder %v149, %v439
    %vm600 = vcmp.eq.s32.totalorder %v149, %v440
    %vm601 = vcmp.eq.s32.totalorder %v150, %v439
    %vm602 = vcmp.eq.s32.totalorder %v150, %v440
    %vm603 = vcmp.eq.s32.totalorder %v151, %v439
    %vm604 = vcmp.eq.s32.totalorder %v151, %v440
    %vm605 = vcmp.eq.s32.totalorder %v152, %v439
    %vm606 = vcmp.eq.s32.totalorder %v152, %v440
    %vm607 = vcmp.eq.s32.totalorder %v153, %v439
    %vm608 = vcmp.eq.s32.totalorder %v153, %v440
    %vm609 = vcmp.eq.s32.totalorder %v154, %v439
    %vm610 = vcmp.eq.s32.totalorder %v154, %v440
    %vm611 = vcmp.eq.s32.totalorder %v155, %v439
    %vm612 = vcmp.eq.s32.totalorder %v155, %v440
    %vm613 = vcmp.eq.s32.totalorder %v156, %v439
    %vm614 = vcmp.eq.s32.totalorder %v156, %v440
    %vm615 = vcmp.eq.s32.totalorder %v157, %v439
    %vm616 = vcmp.eq.s32.totalorder %v157, %v440
    %vm617 = vcmp.eq.s32.totalorder %v158, %v439
    %vm618 = vcmp.eq.s32.totalorder %v158, %v440
    %vm619 = vcmp.eq.s32.totalorder %v159, %v439
    %vm620 = vcmp.eq.s32.totalorder %v159, %v440
    %vm621 = vcmp.eq.s32.totalorder %v160, %v439
    %vm622 = vcmp.eq.s32.totalorder %v160, %v440
    %vm623 = vcmp.eq.s32.totalorder %v161, %v439
    %vm624 = vcmp.eq.s32.totalorder %v161, %v440
    %vm625 = vcmp.eq.s32.totalorder %v162, %v439
    %vm626 = vcmp.eq.s32.totalorder %v162, %v440
    %vm627 = vcmp.eq.s32.totalorder %v163, %v439
    %vm628 = vcmp.eq.s32.totalorder %v163, %v440
    %vm629 = vcmp.eq.s32.totalorder %v164, %v439
    %vm630 = vcmp.eq.s32.totalorder %v164, %v440
    %vm631 = vcmp.eq.s32.totalorder %v165, %v439
    %vm632 = vcmp.eq.s32.totalorder %v165, %v440
    %vm633 = vcmp.eq.s32.totalorder %v166, %v439
    %vm634 = vcmp.eq.s32.totalorder %v166, %v440
    %vm635 = vcmp.eq.s32.totalorder %v167, %v439
    %vm636 = vcmp.eq.s32.totalorder %v167, %v440
    %vm637 = vcmp.eq.s32.totalorder %v168, %v439
    %vm638 = vcmp.eq.s32.totalorder %v168, %v440
    %vm639 = vcmp.eq.s32.totalorder %v169, %v439
    %vm640 = vcmp.eq.s32.totalorder %v169, %v440
    %vm641 = vcmp.eq.s32.totalorder %v170, %v439
    %vm642 = vcmp.eq.s32.totalorder %v170, %v440
    %vm643 = vcmp.eq.s32.totalorder %v171, %v439
    %vm644 = vcmp.eq.s32.totalorder %v171, %v440
    %vm645 = vcmp.eq.s32.totalorder %v172, %v439
    %vm646 = vcmp.eq.s32.totalorder %v172, %v440
    %vm647 = vcmp.eq.s32.totalorder %v173, %v439
    %vm648 = vcmp.eq.s32.totalorder %v173, %v440
    %vm649 = vcmp.eq.s32.totalorder %v174, %v439
    %vm650 = vcmp.eq.s32.totalorder %v174, %v440
    %vm651 = vcmp.eq.s32.totalorder %v175, %v439
    %vm652 = vcmp.eq.s32.totalorder %v175, %v440
    %vm653 = vcmp.eq.s32.totalorder %v176, %v439
    %vm654 = vcmp.eq.s32.totalorder %v176, %v440
    %vm655 = vcmp.eq.s32.totalorder %v177, %v439
    %vm656 = vcmp.eq.s32.totalorder %v177, %v440
    %vm657 = vcmp.eq.s32.totalorder %v178, %v439
    %vm658 = vcmp.eq.s32.totalorder %v178, %v440
    %vm659 = vcmp.eq.s32.totalorder %v179, %v439
    %vm660 = vcmp.eq.s32.totalorder %v179, %v440
    %vm661 = vcmp.eq.s32.totalorder %v180, %v439
    %vm662 = vcmp.eq.s32.totalorder %v180, %v440
    %vm663 = vcmp.eq.s32.totalorder %v181, %v439
    %vm664 = vcmp.eq.s32.totalorder %v181, %v440
    %vm665 = vcmp.eq.s32.totalorder %v182, %v439
    %vm666 = vcmp.eq.s32.totalorder %v182, %v440
    %vm667 = vcmp.eq.s32.totalorder %v183, %v439
    %vm668 = vcmp.eq.s32.totalorder %v183, %v440
    %vm669 = vcmp.eq.s32.totalorder %v184, %v439
    %vm670 = vcmp.eq.s32.totalorder %v184, %v440
    %vm671 = vcmp.eq.s32.totalorder %v185, %v439
    %vm672 = vcmp.eq.s32.totalorder %v185, %v440
    %vm673 = vcmp.eq.s32.totalorder %v186, %v439
    %vm674 = vcmp.eq.s32.totalorder %v186, %v440
    %vm675 = vcmp.eq.s32.totalorder %v187, %v439
    %vm676 = vcmp.eq.s32.totalorder %v187, %v440
    %vm677 = vcmp.eq.s32.totalorder %v188, %v439
    %vm678 = vcmp.eq.s32.totalorder %v188, %v440
    %vm679 = vcmp.eq.s32.totalorder %v189, %v439
    %vm680 = vcmp.eq.s32.totalorder %v189, %v440
    %vm681 = vcmp.eq.s32.totalorder %v190, %v439
    %vm682 = vcmp.eq.s32.totalorder %v190, %v440
    %vm683 = vmor %vm195, %vm441
    %vm684 = vmor %vm196, %vm442
    %vm685 = vmor %vm197, %vm443
    %vm686 = vmor %vm198, %vm444
    %vm687 = vmor %vm199, %vm445
    %vm688 = vmor %vm200, %vm446
    %vm689 = vmor %vm201, %vm447
    %vm690 = vmor %vm202, %vm448
    %vm691 = vmor %vm203, %vm449
    %vm692 = vmor %vm204, %vm450
    %vm693 = vmor %vm205, %vm451
    %vm694 = vmor %vm206, %vm452
    %vm695 = vmor %vm207, %vm453
    %vm696 = vmor %vm208, %vm454
    %vm697 = vmor %vm209, %vm455
    %vm698 = vmor %vm210, %vm456
    %vm699 = vmor %vm211, %vm457
    %vm700 = vmor %vm212, %vm458
    %vm701 = vmor %vm213, %vm459
    %vm702 = vmor %vm214, %vm460
    %vm703 = vmor %vm215, %vm461
    %vm704 = vmor %vm216, %vm462
    %vm705 = vmor %vm217, %vm463
    %vm706 = vmor %vm218, %vm464
    %vm707 = vmor %vm219, %vm465
    %vm708 = vmor %vm220, %vm466
    %vm709 = vmor %vm221, %vm467
    %vm710 = vmor %vm222, %vm468
    %vm711 = vmor %vm223, %vm469
    %vm712 = vmor %vm224, %vm470
    %vm713 = vmor %vm225, %vm471
    %vm714 = vmor %vm226, %vm472
    %vm715 = vmor %vm227, %vm473
    %vm716 = vmor %vm228, %vm474
    %vm717 = vmor %vm229, %vm475
    %vm718 = vmor %vm230, %vm476
    %vm719 = vmor %vm231, %vm477
    %vm720 = vmor %vm232, %vm478
    %vm721 = vmor %vm233, %vm479
    %vm722 = vmor %vm234, %vm480
    %vm723 = vmor %vm235, %vm481
    %vm724 = vmor %vm236, %vm482
    %vm725 = vmor %vm237, %vm483
    %vm726 = vmor %vm238, %vm484
    %vm727 = vmor %vm239, %vm485
    %vm728 = vmor %vm240, %vm486
    %vm729 = vmor %vm241, %vm487
    %vm730 = vmor %vm242, %vm488
    %vm731 = vmor %vm243, %vm489
    %vm732 = vmor %vm244, %vm490
    %vm733 = vmor %vm245, %vm491
    %vm734 = vmor %vm246, %vm492
    %vm735 = vmor %vm247, %vm493
    %vm736 = vmor %vm248, %vm494
    %vm737 = vmor %vm249, %vm495
    %vm738 = vmor %vm250, %vm496
    %vm739 = vmor %vm251, %vm497
    %vm740 = vmor %vm252, %vm498
    %vm741 = vmor %vm253, %vm499
    %vm742 = vmor %vm254, %vm500
    %vm743 = vmor %vm255, %vm501
    %vm744 = vmor %vm256, %vm502
    %vm745 = vmor %vm257, %vm503
    %vm746 = vmor %vm258, %vm504
    %vm747 = vmor %vm259, %vm505
    %vm748 = vmor %vm260, %vm506
    %vm749 = vmor %vm261, %vm507
    %vm750 = vmor %vm262, %vm508
    %vm751 = vmor %vm263, %vm509
    %vm752 = vmor %vm264, %vm510
    %vm753 = vmor %vm265, %vm511
    %vm754 = vmor %vm266, %vm512
    %vm755 = vmor %vm267, %vm513
    %vm756 = vmor %vm268, %vm514
    %vm757 = vmor %vm269, %vm515
    %vm758 = vmor %vm270, %vm516
    %vm759 = vmor %vm271, %vm517
    %vm760 = vmor %vm272, %vm518
    %vm761 = vmor %vm273, %vm519
    %vm762 = vmor %vm274, %vm520
    %vm763 = vmor %vm275, %vm521
    %vm764 = vmor %vm276, %vm522
    %vm765 = vmor %vm277, %vm523
    %vm766 = vmor %vm278, %vm524
    %vm767 = vmor %vm279, %vm525
    %vm768 = vmor %vm280, %vm526
    %vm769 = vmor %vm281, %vm527
    %vm770 = vmor %vm282, %vm528
    %vm771 = vmor %vm283, %vm529
    %vm772 = vmor %vm284, %vm530
    %vm773 = vmor %vm285, %vm531
    %vm774 = vmor %vm286, %vm532
    %vm775 = vmor %vm287, %vm533
    %vm776 = vmor %vm288, %vm534
    %vm777 = vmor %vm289, %vm535
    %vm778 = vmor %vm290, %vm536
    %vm779 = vmor %vm291, %vm537
    %vm780 = vmor %vm292, %vm538
    %vm781 = vmor %vm293, %vm539
    %vm782 = vmor %vm294, %vm540
    %vm783 = vmor %vm295, %vm541
    %vm784 = vmor %vm296, %vm542
    %vm785 = vmor %vm297, %vm543
    %vm786 = vmor %vm298, %vm544
    %vm787 = vmor %vm299, %vm545
    %vm788 = vmor %vm300, %vm546
    %vm789 = vmor %vm301, %vm547
    %vm790 = vmor %vm302, %vm548
    %vm791 = vmor %vm303, %vm549
    %vm792 = vmor %vm304, %vm550
    %vm793 = vmor %vm305, %vm551
    %vm794 = vmor %vm306, %vm552
    %vm795 = vmor %vm307, %vm553
    %vm796 = vmor %vm308, %vm554
    %vm797 = vmor %vm309, %vm555
    %vm798 = vmor %vm310, %vm556
    %vm799 = vmor %vm311, %vm557
    %vm800 = vmor %vm312, %vm558
    %vm801 = vmor %vm313, %vm559
    %vm802 = vmor %vm314, %vm560
    %vm803 = vmor %vm315, %vm561
    %vm804 = vmor %vm316, %vm562
    %vm805 = vmor %vm317, %vm563
    %vm806 = vmor %vm318, %vm564
    %vm807 = vmor %vm319, %vm565
    %vm808 = vmor %vm320, %vm566
    %vm809 = vmor %vm321, %vm567
    %vm810 = vmor %vm322, %vm568
    %vm811 = vmor %vm323, %vm569
    %vm812 = vmor %vm324, %vm570
    %vm813 = vmor %vm325, %vm571
    %vm814 = vmor %vm326, %vm572
    %vm815 = vmor %vm327, %vm573
    %vm816 = vmor %vm328, %vm574
    %vm817 = vmor %vm329, %vm575
    %vm818 = vmor %vm330, %vm576
    %vm819 = vmor %vm331, %vm577
    %vm820 = vmor %vm332, %vm578
    %vm821 = vmor %vm333, %vm579
    %vm822 = vmor %vm334, %vm580
    %vm823 = vmor %vm335, %vm581
    %vm824 = vmor %vm336, %vm582
    %vm825 = vmor %vm337, %vm583
    %vm826 = vmor %vm338, %vm584
    %vm827 = vmor %vm339, %vm585
    %vm828 = vmor %vm340, %vm586
    %vm829 = vmor %vm341, %vm587
    %vm830 = vmor %vm342, %vm588
    %vm831 = vmor %vm343, %vm589
    %vm832 = vmor %vm344, %vm590
    %vm833 = vmor %vm345, %vm591
    %vm834 = vmor %vm346, %vm592
    %vm835 = vmor %vm347, %vm593
    %vm836 = vmor %vm348, %vm594
    %vm837 = vmor %vm349, %vm595
    %vm838 = vmor %vm350, %vm596
    %vm839 = vmor %vm351, %vm597
    %vm840 = vmor %vm352, %vm598
    %vm841 = vmor %vm353, %vm599
    %vm842 = vmor %vm354, %vm600
    %vm843 = vmor %vm355, %vm601
    %vm844 = vmor %vm356, %vm602
    %vm845 = vmor %vm357, %vm603
    %vm846 = vmor %vm358, %vm604
    %vm847 = vmor %vm359, %vm605
    %vm848 = vmor %vm360, %vm606
    %vm849 = vmor %vm361, %vm607
    %vm850 = vmor %vm362, %vm608
    %vm851 = vmor %vm363, %vm609
    %vm852 = vmor %vm364, %vm610
    %vm853 = vmor %vm365, %vm611
    %vm854 = vmor %vm366, %vm612
    %vm855 = vmor %vm367, %vm613
    %vm856 = vmor %vm368, %vm614
    %vm857 = vmor %vm369, %vm615
    %vm858 = vmor %vm370, %vm616
    %vm859 = vmor %vm371, %vm617
    %vm860 = vmor %vm372, %vm618
    %vm861 = vmor %vm373, %vm619
    %vm862 = vmor %vm374, %vm620
    %vm863 = vmor %vm375, %vm621
    %vm864 = vmor %vm376, %vm622
    %vm865 = vmor %vm377, %vm623
    %vm866 = vmor %vm378, %vm624
    %vm867 = vmor %vm379, %vm625
    %vm868 = vmor %vm380, %vm626
    %vm869 = vmor %vm381, %vm627
    %vm870 = vmor %vm382, %vm628
    %vm871 = vmor %vm383, %vm629
    %vm872 = vmor %vm384, %vm630
    %vm873 = vmor %vm385, %vm631
    %vm874 = vmor %vm386, %vm632
    %vm875 = vmor %vm387, %vm633
    %vm876 = vmor %vm388, %vm634
    %vm877 = vmor %vm389, %vm635
    %vm878 = vmor %vm390, %vm636
    %vm879 = vmor %vm391, %vm637
    %vm880 = vmor %vm392, %vm638
    %vm881 = vmor %vm393, %vm639
    %vm882 = vmor %vm394, %vm640
    %vm883 = vmor %vm395, %vm641
    %vm884 = vmor %vm396, %vm642
    %vm885 = vmor %vm397, %vm643
    %vm886 = vmor %vm398, %vm644
    %vm887 = vmor %vm399, %vm645
    %vm888 = vmor %vm400, %vm646
    %vm889 = vmor %vm401, %vm647
    %vm890 = vmor %vm402, %vm648
    %vm891 = vmor %vm403, %vm649
    %vm892 = vmor %vm404, %vm650
    %vm893 = vmor %vm405, %vm651
    %vm894 = vmor %vm406, %vm652
    %vm895 = vmor %vm407, %vm653
    %vm896 = vmor %vm408, %vm654
    %vm897 = vmor %vm409, %vm655
    %vm898 = vmor %vm410, %vm656
    %vm899 = vmor %vm411, %vm657
    %vm900 = vmor %vm412, %vm658
    %vm901 = vmor %vm413, %vm659
    %vm902 = vmor %vm414, %vm660
    %vm903 = vmor %vm415, %vm661
    %vm904 = vmor %vm416, %vm662
    %vm905 = vmor %vm417, %vm663
    %vm906 = vmor %vm418, %vm664
    %vm907 = vmor %vm419, %vm665
    %vm908 = vmor %vm420, %vm666
    %vm909 = vmor %vm421, %vm667
    %vm910 = vmor %vm422, %vm668
    %vm911 = vmor %vm423, %vm669
    %vm912 = vmor %vm424, %vm670
    %vm913 = vmor %vm425, %vm671
    %vm914 = vmor %vm426, %vm672
    %vm915 = vmor %vm427, %vm673
    %vm916 = vmor %vm428, %vm674
    %vm917 = vmor %vm429, %vm675
    %vm918 = vmor %vm430, %vm676
    %vm919 = vmor %vm431, %vm677
    %vm920 = vmor %vm432, %vm678
    %vm921 = vmor %vm433, %vm679
    %vm922 = vmor %vm434, %vm680
    %vm923 = vmor %vm435, %vm681
    %vm924 = vmor %vm436, %vm682
    %v925 = vsel %vm683, 1, 0
    %v926 = vsel %vm684, 1, 0
    %v927 = vsel %vm685, 1, 0
    %v928 = vsel %vm686, 1, 0
    %v929 = vsel %vm687, 1, 0
    %v930 = vsel %vm688, 1, 0
    %v931 = vsel %vm689, 1, 0
    %v932 = vsel %vm690, 1, 0
    %v933 = vsel %vm691, 1, 0
    %v934 = vsel %vm692, 1, 0
    %v935 = vsel %vm693, 1, 0
    %v936 = vsel %vm694, 1, 0
    %v937 = vsel %vm695, 1, 0
    %v938 = vsel %vm696, 1, 0
    %v939 = vsel %vm697, 1, 0
    %v940 = vsel %vm698, 1, 0
    %v941 = vsel %vm699, 1, 0
    %v942 = vsel %vm700, 1, 0
    %v943 = vsel %vm701, 1, 0
    %v944 = vsel %vm702, 1, 0
    %v945 = vsel %vm703, 1, 0
    %v946 = vsel %vm704, 1, 0
    %v947 = vsel %vm705, 1, 0
    %v948 = vsel %vm706, 1, 0
    %v949 = vsel %vm707, 1, 0
    %v950 = vsel %vm708, 1, 0
    %v951 = vsel %vm709, 1, 0
    %v952 = vsel %vm710, 1, 0
    %v953 = vsel %vm711, 1, 0
    %v954 = vsel %vm712, 1, 0
    %v955 = vsel %vm713, 1, 0
    %v956 = vsel %vm714, 1, 0
    %v957 = vsel %vm715, 1, 0
    %v958 = vsel %vm716, 1, 0
    %v959 = vsel %vm717, 1, 0
    %v960 = vsel %vm718, 1, 0
    %v961 = vsel %vm719, 1, 0
    %v962 = vsel %vm720, 1, 0
    %v963 = vsel %vm721, 1, 0
    %v964 = vsel %vm722, 1, 0
    %v965 = vsel %vm723, 1, 0
    %v966 = vsel %vm724, 1, 0
    %v967 = vsel %vm725, 1, 0
    %v968 = vsel %vm726, 1, 0
    %v969 = vsel %vm727, 1, 0
    %v970 = vsel %vm728, 1, 0
    %v971 = vsel %vm729, 1, 0
    %v972 = vsel %vm730, 1, 0
    %v973 = vsel %vm731, 1, 0
    %v974 = vsel %vm732, 1, 0
    %v975 = vsel %vm733, 1, 0
    %v976 = vsel %vm734, 1, 0
    %v977 = vsel %vm735, 1, 0
    %v978 = vsel %vm736, 1, 0
    %v979 = vsel %vm737, 1, 0
    %v980 = vsel %vm738, 1, 0
    %v981 = vsel %vm739, 1, 0
    %v982 = vsel %vm740, 1, 0
    %v983 = vsel %vm741, 1, 0
    %v984 = vsel %vm742, 1, 0
    %v985 = vsel %vm743, 1, 0
    %v986 = vsel %vm744, 1, 0
    %v987 = vsel %vm745, 1, 0
    %v988 = vsel %vm746, 1, 0
    %v989 = vsel %vm747, 1, 0
    %v990 = vsel %vm748, 1, 0
    %v991 = vsel %vm749, 1, 0
    %v992 = vsel %vm750, 1, 0
    %v993 = vsel %vm751, 1, 0
    %v994 = vsel %vm752, 1, 0
    %v995 = vsel %vm753, 1, 0
    %v996 = vsel %vm754, 1, 0
    %v997 = vsel %vm755, 1, 0
    %v998 = vsel %vm756, 1, 0
    %v999 = vsel %vm757, 1, 0
    %v1000 = vsel %vm758, 1, 0
    %v1001 = vsel %vm759, 1, 0
    %v1002 = vsel %vm760, 1, 0
    %v1003 = vsel %vm761, 1, 0
    %v1004 = vsel %vm762, 1, 0
    %v1005 = vsel %vm763, 1, 0
    %v1006 = vsel %vm764, 1, 0
    %v1007 = vsel %vm765, 1, 0
    %v1008 = vsel %vm766, 1, 0
    %v1009 = vsel %vm767, 1, 0
    %v1010 = vsel %vm768, 1, 0
    %v1011 = vsel %vm769, 1, 0
    %v1012 = vsel %vm770, 1, 0
    %v1013 = vsel %vm771, 1, 0
    %v1014 = vsel %vm772, 1, 0
    %v1015 = vsel %vm773, 1, 0
    %v1016 = vsel %vm774, 1, 0
    %v1017 = vsel %vm775, 1, 0
    %v1018 = vsel %vm776, 1, 0
    %v1019 = vsel %vm777, 1, 0
    %v1020 = vsel %vm778, 1, 0
    %v1021 = vsel %vm779, 1, 0
    %v1022 = vsel %vm780, 1, 0
    %v1023 = vsel %vm781, 1, 0
    %v1024 = vsel %vm782, 1, 0
    %v1025 = vsel %vm783, 1, 0
    %v1026 = vsel %vm784, 1, 0
    %v1027 = vsel %vm785, 1, 0
    %v1028 = vsel %vm786, 1, 0
    %v1029 = vsel %vm787, 1, 0
    %v1030 = vsel %vm788, 1, 0
    %v1031 = vsel %vm789, 1, 0
    %v1032 = vsel %vm790, 1, 0
    %v1033 = vsel %vm791, 1, 0
    %v1034 = vsel %vm792, 1, 0
    %v1035 = vsel %vm793, 1, 0
    %v1036 = vsel %vm794, 1, 0
    %v1037 = vsel %vm795, 1, 0
    %v1038 = vsel %vm796, 1, 0
    %v1039 = vsel %vm797, 1, 0
    %v1040 = vsel %vm798, 1, 0
    %v1041 = vsel %vm799, 1, 0
    %v1042 = vsel %vm800, 1, 0
    %v1043 = vsel %vm801, 1, 0
    %v1044 = vsel %vm802, 1, 0
    %v1045 = vsel %vm803, 1, 0
    %v1046 = vsel %vm804, 1, 0
    %v1047 = vsel %vm805, 1, 0
    %v1048 = vsel %vm806, 1, 0
    %v1049 = vsel %vm807, 1, 0
    %v1050 = vsel %vm808, 1, 0
    %v1051 = vsel %vm809, 1, 0
    %v1052 = vsel %vm810, 1, 0
    %v1053 = vsel %vm811, 1, 0
    %v1054 = vsel %vm812, 1, 0
    %v1055 = vsel %vm813, 1, 0
    %v1056 = vsel %vm814, 1, 0
    %v1057 = vsel %vm815, 1, 0
    %v1058 = vsel %vm816, 1, 0
    %v1059 = vsel %vm817, 1, 0
    %v1060 = vsel %vm818, 1, 0
    %v1061 = vsel %vm819, 1, 0
    %v1062 = vsel %vm820, 1, 0
    %v1063 = vsel %vm821, 1, 0
    %v1064 = vsel %vm822, 1, 0
    %v1065 = vsel %vm823, 1, 0
    %v1066 = vsel %vm824, 1, 0
    %v1067 = vsel %vm825, 1, 0
    %v1068 = vsel %vm826, 1, 0
    %v1069 = vsel %vm827, 1, 0
    %v1070 = vsel %vm828, 1, 0
    %v1071 = vsel %vm829, 1, 0
    %v1072 = vsel %vm830, 1, 0
    %v1073 = vsel %vm831, 1, 0
    %v1074 = vsel %vm832, 1, 0
    %v1075 = vsel %vm833, 1, 0
    %v1076 = vsel %vm834, 1, 0
    %v1077 = vsel %vm835, 1, 0
    %v1078 = vsel %vm836, 1, 0
    %v1079 = vsel %vm837, 1, 0
    %v1080 = vsel %vm838, 1, 0
    %v1081 = vsel %vm839, 1, 0
    %v1082 = vsel %vm840, 1, 0
    %v1083 = vsel %vm841, 1, 0
    %v1084 = vsel %vm842, 1, 0
    %v1085 = vsel %vm843, 1, 0
    %v1086 = vsel %vm844, 1, 0
    %v1087 = vsel %vm845, 1, 0
    %v1088 = vsel %vm846, 1, 0
    %v1089 = vsel %vm847, 1, 0
    %v1090 = vsel %vm848, 1, 0
    %v1091 = vsel %vm849, 1, 0
    %v1092 = vsel %vm850, 1, 0
    %v1093 = vsel %vm851, 1, 0
    %v1094 = vsel %vm852, 1, 0
    %v1095 = vsel %vm853, 1, 0
    %v1096 = vsel %vm854, 1, 0
    %v1097 = vsel %vm855, 1, 0
    %v1098 = vsel %vm856, 1, 0
    %v1099 = vsel %vm857, 1, 0
    %v1100 = vsel %vm858, 1, 0
    %v1101 = vsel %vm859, 1, 0
    %v1102 = vsel %vm860, 1, 0
    %v1103 = vsel %vm861, 1, 0
    %v1104 = vsel %vm862, 1, 0
    %v1105 = vsel %vm863, 1, 0
    %v1106 = vsel %vm864, 1, 0
    %v1107 = vsel %vm865, 1, 0
    %v1108 = vsel %vm866, 1, 0
    %v1109 = vsel %vm867, 1, 0
    %v1110 = vsel %vm868, 1, 0
    %v1111 = vsel %vm869, 1, 0
    %v1112 = vsel %vm870, 1, 0
    %v1113 = vsel %vm871, 1, 0
    %v1114 = vsel %vm872, 1, 0
    %v1115 = vsel %vm873, 1, 0
    %v1116 = vsel %vm874, 1, 0
    %v1117 = vsel %vm875, 1, 0
    %v1118 = vsel %vm876, 1, 0
    %v1119 = vsel %vm877, 1, 0
    %v1120 = vsel %vm878, 1, 0
    %v1121 = vsel %vm879, 1, 0
    %v1122 = vsel %vm880, 1, 0
    %v1123 = vsel %vm881, 1, 0
    %v1124 = vsel %vm882, 1, 0
    %v1125 = vsel %vm883, 1, 0
    %v1126 = vsel %vm884, 1, 0
    %v1127 = vsel %vm885, 1, 0
    %v1128 = vsel %vm886, 1, 0
    %v1129 = vsel %vm887, 1, 0
    %v1130 = vsel %vm888, 1, 0
    %v1131 = vsel %vm889, 1, 0
    %v1132 = vsel %vm890, 1, 0
    %v1133 = vsel %vm891, 1, 0
    %v1134 = vsel %vm892, 1, 0
    %v1135 = vsel %vm893, 1, 0
    %v1136 = vsel %vm894, 1, 0
    %v1137 = vsel %vm895, 1, 0
    %v1138 = vsel %vm896, 1, 0
    %v1139 = vsel %vm897, 1, 0
    %v1140 = vsel %vm898, 1, 0
    %v1141 = vsel %vm899, 1, 0
    %v1142 = vsel %vm900, 1, 0
    %v1143 = vsel %vm901, 1, 0
    %v1144 = vsel %vm902, 1, 0
    %v1145 = vsel %vm903, 1, 0
    %v1146 = vsel %vm904, 1, 0
    %v1147 = vsel %vm905, 1, 0
    %v1148 = vsel %vm906, 1, 0
    %v1149 = vsel %vm907, 1, 0
    %v1150 = vsel %vm908, 1, 0
    %v1151 = vsel %vm909, 1, 0
    %v1152 = vsel %vm910, 1, 0
    %v1153 = vsel %vm911, 1, 0
    %v1154 = vsel %vm912, 1, 0
    %v1155 = vsel %vm913, 1, 0
    %v1156 = vsel %vm914, 1, 0
    %v1157 = vsel %vm915, 1, 0
    %v1158 = vsel %vm916, 1, 0
    %v1159 = vsel %vm917, 1, 0
    %v1160 = vsel %vm918, 1, 0
    %v1161 = vsel %vm919, 1, 0
    %v1162 = vsel %vm920, 1, 0
    %v1163 = vsel %vm921, 1, 0
    %v1164 = vsel %vm922, 1, 0
    %v1165 = vsel %vm923, 1, 0
    %v1166 = vsel %vm924, 1, 0
    %v1167 = vcvt.s32.f32 %v925
    %v1168 = vcvt.s32.f32 %v926
    %v1169 = vcvt.s32.f32 %v927
    %v1170 = vcvt.s32.f32 %v928
    %v1171 = vcvt.s32.f32 %v929
    %v1172 = vcvt.s32.f32 %v930
    %v1173 = vcvt.s32.f32 %v931
    %v1174 = vcvt.s32.f32 %v932
    %v1175 = vcvt.s32.f32 %v933
    %v1176 = vcvt.s32.f32 %v934
    %v1177 = vcvt.s32.f32 %v935
    %v1178 = vcvt.s32.f32 %v936
    %v1179 = vcvt.s32.f32 %v937
    %v1180 = vcvt.s32.f32 %v938
    %v1181 = vcvt.s32.f32 %v939
    %v1182 = vcvt.s32.f32 %v940
    %v1183 = vcvt.s32.f32 %v941
    %v1184 = vcvt.s32.f32 %v942
    %v1185 = vcvt.s32.f32 %v943
    %v1186 = vcvt.s32.f32 %v944
    %v1187 = vcvt.s32.f32 %v945
    %v1188 = vcvt.s32.f32 %v946
    %v1189 = vcvt.s32.f32 %v947
    %v1190 = vcvt.s32.f32 %v948
    %v1191 = vcvt.s32.f32 %v949
    %v1192 = vcvt.s32.f32 %v950
    %v1193 = vcvt.s32.f32 %v951
    %v1194 = vcvt.s32.f32 %v952
    %v1195 = vcvt.s32.f32 %v953
    %v1196 = vcvt.s32.f32 %v954
    %v1197 = vcvt.s32.f32 %v955
    %v1198 = vcvt.s32.f32 %v956
    %v1199 = vcvt.s32.f32 %v957
    %v1200 = vcvt.s32.f32 %v958
    %v1201 = vcvt.s32.f32 %v959
    %v1202 = vcvt.s32.f32 %v960
    %v1203 = vcvt.s32.f32 %v961
    %v1204 = vcvt.s32.f32 %v962
    %v1205 = vcvt.s32.f32 %v963
    %v1206 = vcvt.s32.f32 %v964
    %v1207 = vcvt.s32.f32 %v965
    %v1208 = vcvt.s32.f32 %v966
    %v1209 = vcvt.s32.f32 %v967
    %v1210 = vcvt.s32.f32 %v968
    %v1211 = vcvt.s32.f32 %v969
    %v1212 = vcvt.s32.f32 %v970
    %v1213 = vcvt.s32.f32 %v971
    %v1214 = vcvt.s32.f32 %v972
    %v1215 = vcvt.s32.f32 %v973
    %v1216 = vcvt.s32.f32 %v974
    %v1217 = vcvt.s32.f32 %v975
    %v1218 = vcvt.s32.f32 %v976
    %v1219 = vcvt.s32.f32 %v977
    %v1220 = vcvt.s32.f32 %v978
    %v1221 = vcvt.s32.f32 %v979
    %v1222 = vcvt.s32.f32 %v980
    %v1223 = vcvt.s32.f32 %v981
    %v1224 = vcvt.s32.f32 %v982
    %v1225 = vcvt.s32.f32 %v983
    %v1226 = vcvt.s32.f32 %v984
    %v1227 = vcvt.s32.f32 %v985
    %v1228 = vcvt.s32.f32 %v986
    %v1229 = vcvt.s32.f32 %v987
    %v1230 = vcvt.s32.f32 %v988
    %v1231 = vcvt.s32.f32 %v989
    %v1232 = vcvt.s32.f32 %v990
    %v1233 = vcvt.s32.f32 %v991
    %v1234 = vcvt.s32.f32 %v992
    %v1235 = vcvt.s32.f32 %v993
    %v1236 = vcvt.s32.f32 %v994
    %v1237 = vcvt.s32.f32 %v995
    %v1238 = vcvt.s32.f32 %v996
    %v1239 = vcvt.s32.f32 %v997
    %v1240 = vcvt.s32.f32 %v998
    %v1241 = vcvt.s32.f32 %v999
    %v1242 = vcvt.s32.f32 %v1000
    %v1243 = vcvt.s32.f32 %v1001
    %v1244 = vcvt.s32.f32 %v1002
    %v1245 = vcvt.s32.f32 %v1003
    %v1246 = vcvt.s32.f32 %v1004
    %v1247 = vcvt.s32.f32 %v1005
    %v1248 = vcvt.s32.f32 %v1006
    %v1249 = vcvt.s32.f32 %v1007
    %v1250 = vcvt.s32.f32 %v1008
    %v1251 = vcvt.s32.f32 %v1009
    %v1252 = vcvt.s32.f32 %v1010
    %v1253 = vcvt.s32.f32 %v1011
    %v1254 = vcvt.s32.f32 %v1012
    %v1255 = vcvt.s32.f32 %v1013
    %v1256 = vcvt.s32.f32 %v1014
    %v1257 = vcvt.s32.f32 %v1015
    %v1258 = vcvt.s32.f32 %v1016
    %v1259 = vcvt.s32.f32 %v1017
    %v1260 = vcvt.s32.f32 %v1018
    %v1261 = vcvt.s32.f32 %v1019
    %v1262 = vcvt.s32.f32 %v1020
    %v1263 = vcvt.s32.f32 %v1021
    %v1264 = vcvt.s32.f32 %v1022
    %v1265 = vcvt.s32.f32 %v1023
    %v1266 = vcvt.s32.f32 %v1024
    %v1267 = vcvt.s32.f32 %v1025
    %v1268 = vcvt.s32.f32 %v1026
    %v1269 = vcvt.s32.f32 %v1027
    %v1270 = vcvt.s32.f32 %v1028
    %v1271 = vcvt.s32.f32 %v1029
    %v1272 = vcvt.s32.f32 %v1030
    %v1273 = vcvt.s32.f32 %v1031
    %v1274 = vcvt.s32.f32 %v1032
    %v1275 = vcvt.s32.f32 %v1033
    %v1276 = vcvt.s32.f32 %v1034
    %v1277 = vcvt.s32.f32 %v1035
    %v1278 = vcvt.s32.f32 %v1036
    %v1279 = vcvt.s32.f32 %v1037
    %v1280 = vcvt.s32.f32 %v1038
    %v1281 = vcvt.s32.f32 %v1039
    %v1282 = vcvt.s32.f32 %v1040
    %v1283 = vcvt.s32.f32 %v1041
    %v1284 = vcvt.s32.f32 %v1042
    %v1285 = vcvt.s32.f32 %v1043
    %v1286 = vcvt.s32.f32 %v1044
    %v1287 = vcvt.s32.f32 %v1045
    %v1288 = vcvt.s32.f32 %v1046
    %v1289 = vcvt.s32.f32 %v1047
    %v1290 = vcvt.s32.f32 %v1048
    %v1291 = vcvt.s32.f32 %v1049
    %v1292 = vcvt.s32.f32 %v1050
    %v1293 = vcvt.s32.f32 %v1051
    %v1294 = vcvt.s32.f32 %v1052
    %v1295 = vcvt.s32.f32 %v1053
    %v1296 = vcvt.s32.f32 %v1054
    %v1297 = vcvt.s32.f32 %v1055
    %v1298 = vcvt.s32.f32 %v1056
    %v1299 = vcvt.s32.f32 %v1057
    %v1300 = vcvt.s32.f32 %v1058
    %v1301 = vcvt.s32.f32 %v1059
    %v1302 = vcvt.s32.f32 %v1060
    %v1303 = vcvt.s32.f32 %v1061
    %v1304 = vcvt.s32.f32 %v1062
    %v1305 = vcvt.s32.f32 %v1063
    %v1306 = vcvt.s32.f32 %v1064
    %v1307 = vcvt.s32.f32 %v1065
    %v1308 = vcvt.s32.f32 %v1066
    %v1309 = vcvt.s32.f32 %v1067
    %v1310 = vcvt.s32.f32 %v1068
    %v1311 = vcvt.s32.f32 %v1069
    %v1312 = vcvt.s32.f32 %v1070
    %v1313 = vcvt.s32.f32 %v1071
    %v1314 = vcvt.s32.f32 %v1072
    %v1315 = vcvt.s32.f32 %v1073
    %v1316 = vcvt.s32.f32 %v1074
    %v1317 = vcvt.s32.f32 %v1075
    %v1318 = vcvt.s32.f32 %v1076
    %v1319 = vcvt.s32.f32 %v1077
    %v1320 = vcvt.s32.f32 %v1078
    %v1321 = vcvt.s32.f32 %v1079
    %v1322 = vcvt.s32.f32 %v1080
    %v1323 = vcvt.s32.f32 %v1081
    %v1324 = vcvt.s32.f32 %v1082
    %v1325 = vcvt.s32.f32 %v1083
    %v1326 = vcvt.s32.f32 %v1084
    %v1327 = vcvt.s32.f32 %v1085
    %v1328 = vcvt.s32.f32 %v1086
    %v1329 = vcvt.s32.f32 %v1087
    %v1330 = vcvt.s32.f32 %v1088
    %v1331 = vcvt.s32.f32 %v1089
    %v1332 = vcvt.s32.f32 %v1090
    %v1333 = vcvt.s32.f32 %v1091
    %v1334 = vcvt.s32.f32 %v1092
    %v1335 = vcvt.s32.f32 %v1093
    %v1336 = vcvt.s32.f32 %v1094
    %v1337 = vcvt.s32.f32 %v1095
    %v1338 = vcvt.s32.f32 %v1096
    %v1339 = vcvt.s32.f32 %v1097
    %v1340 = vcvt.s32.f32 %v1098
    %v1341 = vcvt.s32.f32 %v1099
    %v1342 = vcvt.s32.f32 %v1100
    %v1343 = vcvt.s32.f32 %v1101
    %v1344 = vcvt.s32.f32 %v1102
    %v1345 = vcvt.s32.f32 %v1103
    %v1346 = vcvt.s32.f32 %v1104
    %v1347 = vcvt.s32.f32 %v1105
    %v1348 = vcvt.s32.f32 %v1106
    %v1349 = vcvt.s32.f32 %v1107
    %v1350 = vcvt.s32.f32 %v1108
    %v1351 = vcvt.s32.f32 %v1109
    %v1352 = vcvt.s32.f32 %v1110
    %v1353 = vcvt.s32.f32 %v1111
    %v1354 = vcvt.s32.f32 %v1112
    %v1355 = vcvt.s32.f32 %v1113
    %v1356 = vcvt.s32.f32 %v1114
    %v1357 = vcvt.s32.f32 %v1115
    %v1358 = vcvt.s32.f32 %v1116
    %v1359 = vcvt.s32.f32 %v1117
    %v1360 = vcvt.s32.f32 %v1118
    %v1361 = vcvt.s32.f32 %v1119
    %v1362 = vcvt.s32.f32 %v1120
    %v1363 = vcvt.s32.f32 %v1121
    %v1364 = vcvt.s32.f32 %v1122
    %v1365 = vcvt.s32.f32 %v1123
    %v1366 = vcvt.s32.f32 %v1124
    %v1367 = vcvt.s32.f32 %v1125
    %v1368 = vcvt.s32.f32 %v1126
    %v1369 = vcvt.s32.f32 %v1127
    %v1370 = vcvt.s32.f32 %v1128
    %v1371 = vcvt.s32.f32 %v1129
    %v1372 = vcvt.s32.f32 %v1130
    %v1373 = vcvt.s32.f32 %v1131
    %v1374 = vcvt.s32.f32 %v1132
    %v1375 = vcvt.s32.f32 %v1133
    %v1376 = vcvt.s32.f32 %v1134
    %v1377 = vcvt.s32.f32 %v1135
    %v1378 = vcvt.s32.f32 %v1136
    %v1379 = vcvt.s32.f32 %v1137
    %v1380 = vcvt.s32.f32 %v1138
    %v1381 = vcvt.s32.f32 %v1139
    %v1382 = vcvt.s32.f32 %v1140
    %v1383 = vcvt.s32.f32 %v1141
    %v1384 = vcvt.s32.f32 %v1142
    %v1385 = vcvt.s32.f32 %v1143
    %v1386 = vcvt.s32.f32 %v1144
    %v1387 = vcvt.s32.f32 %v1145
    %v1388 = vcvt.s32.f32 %v1146
    %v1389 = vcvt.s32.f32 %v1147
    %v1390 = vcvt.s32.f32 %v1148
    %v1391 = vcvt.s32.f32 %v1149
    %v1392 = vcvt.s32.f32 %v1150
    %v1393 = vcvt.s32.f32 %v1151
    %v1394 = vcvt.s32.f32 %v1152
    %v1395 = vcvt.s32.f32 %v1153
    %v1396 = vcvt.s32.f32 %v1154
    %v1397 = vcvt.s32.f32 %v1155
    %v1398 = vcvt.s32.f32 %v1156
    %v1399 = vcvt.s32.f32 %v1157
    %v1400 = vcvt.s32.f32 %v1158
    %v1401 = vcvt.s32.f32 %v1159
    %v1402 = vcvt.s32.f32 %v1160
    %v1403 = vcvt.s32.f32 %v1161
    %v1404 = vcvt.s32.f32 %v1162
    %v1405 = vcvt.s32.f32 %v1163
    %v1406 = vcvt.s32.f32 %v1164
    %v1407 = vcvt.s32.f32 %v1165
    %v1408 = vcvt.s32.f32 %v1166
    %v1409 = vpack.c.bf16 %v1169, %v1167
    %v1410 = vpack.c.bf16 %v1170, %v1168
    %v1411 = vpack.c.bf16 %v1173, %v1171
    %v1412 = vpack.c.bf16 %v1174, %v1172
    %v1413 = vpack.c.bf16 %v1177, %v1175
    %v1414 = vpack.c.bf16 %v1178, %v1176
    %v1415 = vpack.c.bf16 %v1181, %v1179
    %v1416 = vpack.c.bf16 %v1182, %v1180
    %v1417 = vpack.c.bf16 %v1185, %v1183
    %v1418 = vpack.c.bf16 %v1186, %v1184
    %v1419 = vpack.c.bf16 %v1189, %v1187
    %v1420 = vpack.c.bf16 %v1190, %v1188
    %v1421 = vpack.c.bf16 %v1193, %v1191
    %v1422 = vpack.c.bf16 %v1194, %v1192
    %v1423 = vpack.c.bf16 %v1197, %v1195
    %v1424 = vpack.c.bf16 %v1198, %v1196
    %v1425 = vpack.c.bf16 %v1201, %v1199
    %v1426 = vpack.c.bf16 %v1202, %v1200
    %v1427 = vpack.c.bf16 %v1205, %v1203
    %v1428 = vpack.c.bf16 %v1206, %v1204
    %v1429 = vpack.c.bf16 %v1209, %v1207
    %v1430 = vpack.c.bf16 %v1210, %v1208
    %v1431 = vpack.c.bf16 %v1213, %v1211
    %v1432 = vpack.c.bf16 %v1214, %v1212
    %v1433 = vpack.c.bf16 %v1217, %v1215
    %v1434 = vpack.c.bf16 %v1218, %v1216
    %v1435 = vpack.c.bf16 %v1221, %v1219
    %v1436 = vpack.c.bf16 %v1222, %v1220
    %v1437 = vpack.c.bf16 %v1225, %v1223
    %v1438 = vpack.c.bf16 %v1226, %v1224
    %v1439 = vpack.c.bf16 %v1229, %v1227
    %v1440 = vpack.c.bf16 %v1230, %v1228
    %v1441 = vpack.c.bf16 %v1233, %v1231
    %v1442 = vpack.c.bf16 %v1234, %v1232
    %v1443 = vpack.c.bf16 %v1237, %v1235
    %v1444 = vpack.c.bf16 %v1238, %v1236
    %v1445 = vpack.c.bf16 %v1241, %v1239
    %v1446 = vpack.c.bf16 %v1242, %v1240
    %v1447 = vpack.c.bf16 %v1245, %v1243
    %v1448 = vpack.c.bf16 %v1246, %v1244
    %v1449 = vpack.c.bf16 %v1249, %v1247
    %v1450 = vpack.c.bf16 %v1250, %v1248
    %v1451 = vpack.c.bf16 %v1253, %v1251
    %v1452 = vpack.c.bf16 %v1254, %v1252
    %v1453 = vpack.c.bf16 %v1257, %v1255
    %v1454 = vpack.c.bf16 %v1258, %v1256
    %v1455 = vpack.c.bf16 %v1261, %v1259
    %v1456 = vpack.c.bf16 %v1262, %v1260
    %v1457 = vpack.c.bf16 %v1265, %v1263
    %v1458 = vpack.c.bf16 %v1266, %v1264
    %v1459 = vpack.c.bf16 %v1269, %v1267
    %v1460 = vpack.c.bf16 %v1270, %v1268
    %v1461 = vpack.c.bf16 %v1273, %v1271
    %v1462 = vpack.c.bf16 %v1274, %v1272
    %v1463 = vpack.c.bf16 %v1277, %v1275
    %v1464 = vpack.c.bf16 %v1278, %v1276
    %v1465 = vpack.c.bf16 %v1281, %v1279
    %v1466 = vpack.c.bf16 %v1282, %v1280
    %v1467 = vpack.c.bf16 %v1285, %v1283
    %v1468 = vpack.c.bf16 %v1286, %v1284
    %v1469 = vpack.c.bf16 %v1289, %v1287
    %v1470 = vpack.c.bf16 %v1290, %v1288
    %v1471 = vpack.c.bf16 %v1293, %v1291
    %v1472 = vpack.c.bf16 %v1294, %v1292
    %v1473 = vpack.c.bf16 %v1297, %v1295
    %v1474 = vpack.c.bf16 %v1298, %v1296
    %v1475 = vpack.c.bf16 %v1301, %v1299
    %v1476 = vpack.c.bf16 %v1302, %v1300
    %v1477 = vpack.c.bf16 %v1305, %v1303
    %v1478 = vpack.c.bf16 %v1306, %v1304
    %v1479 = vpack.c.bf16 %v1309, %v1307
    %v1480 = vpack.c.bf16 %v1310, %v1308
    %v1481 = vpack.c.bf16 %v1313, %v1311
    %v1482 = vpack.c.bf16 %v1314, %v1312
    %v1483 = vpack.c.bf16 %v1317, %v1315
    %v1484 = vpack.c.bf16 %v1318, %v1316
    %v1485 = vpack.c.bf16 %v1321, %v1319
    %v1486 = vpack.c.bf16 %v1322, %v1320
    %v1487 = vpack.c.bf16 %v1325, %v1323
    %v1488 = vpack.c.bf16 %v1326, %v1324
    %v1489 = vpack.c.bf16 %v1329, %v1327
    %v1490 = vpack.c.bf16 %v1330, %v1328
    %v1491 = vpack.c.bf16 %v1333, %v1331
    %v1492 = vpack.c.bf16 %v1334, %v1332
    %v1493 = vpack.c.bf16 %v1337, %v1335
    %v1494 = vpack.c.bf16 %v1338, %v1336
    %v1495 = vpack.c.bf16 %v1341, %v1339
    %v1496 = vpack.c.bf16 %v1342, %v1340
    %v1497 = vpack.c.bf16 %v1345, %v1343
    %v1498 = vpack.c.bf16 %v1346, %v1344
    %v1499 = vpack.c.bf16 %v1349, %v1347
    %v1500 = vpack.c.bf16 %v1350, %v1348
    %v1501 = vpack.c.bf16 %v1353, %v1351
    %v1502 = vpack.c.bf16 %v1354, %v1352
    %v1503 = vpack.c.bf16 %v1357, %v1355
    %v1504 = vpack.c.bf16 %v1358, %v1356
    %v1505 = vpack.c.bf16 %v1361, %v1359
    %v1506 = vpack.c.bf16 %v1362, %v1360
    %v1507 = vpack.c.bf16 %v1365, %v1363
    %v1508 = vpack.c.bf16 %v1366, %v1364
    %v1509 = vpack.c.bf16 %v1369, %v1367
    %v1510 = vpack.c.bf16 %v1370, %v1368
    %v1511 = vpack.c.bf16 %v1373, %v1371
    %v1512 = vpack.c.bf16 %v1374, %v1372
    %v1513 = vpack.c.bf16 %v1377, %v1375
    %v1514 = vpack.c.bf16 %v1378, %v1376
    %v1515 = vpack.c.bf16 %v1381, %v1379
    %v1516 = vpack.c.bf16 %v1382, %v1380
    %v1517 = vpack.c.bf16 %v1385, %v1383
    %v1518 = vpack.c.bf16 %v1386, %v1384
    %v1519 = vpack.c.bf16 %v1389, %v1387
    %v1520 = vpack.c.bf16 %v1390, %v1388
    %v1521 = vpack.c.bf16 %v1393, %v1391
    %v1522 = vpack.c.bf16 %v1394, %v1392
    %v1523 = vpack.c.bf16 %v1397, %v1395
    %v1524 = vpack.c.bf16 %v1398, %v1396
    %v1525 = vpack.c.bf16 %v1401, %v1399
    %v1526 = vpack.c.bf16 %v1402, %v1400
    %v1527 = vpack.c.bf16 %v1405, %v1403
    %v1528 = vpack.c.bf16 %v1406, %v1404
    %v1529 = vpack.c.bf16 %v1407, %v1407
    %v1530 = vpack.c.bf16 %v1408, %v1408
    %v1531 = vld [vmem:[#allocation5] sm:$0xff]
    %v1532 = vld [vmem:[#allocation5 + $0x8] sm:$0xff]
    %v1533 = vld [vmem:[#allocation5 + $0x10] sm:$0xff]
    %v1534 = vld [vmem:[#allocation5 + $0x18] sm:$0xff]
    %v1535 = vld [vmem:[#allocation5 + $0x20] sm:$0xff]
    %v1536 = vld [vmem:[#allocation5 + $0x28] sm:$0xff]
    %v1537 = vld [vmem:[#allocation5 + $0x30] sm:$0xff]
    %v1538 = vld [vmem:[#allocation5 + $0x38] sm:$0xff]
    %v1539 = vld [vmem:[#allocation5 + $0x40] sm:$0xff]
    %v1540 = vld [vmem:[#allocation5 + $0x48] sm:$0xff]
    %v1541 = vld [vmem:[#allocation5 + $0x50] sm:$0xff]
    %v1542 = vld [vmem:[#allocation5 + $0x58] sm:$0xff]
    %v1543 = vld [vmem:[#allocation5 + $0x60] sm:$0xff]
    %v1544 = vld [vmem:[#allocation5 + $0x68] sm:$0xff]
    %v1545 = vld [vmem:[#allocation5 + $0x70] sm:$0xff]
    %v1546 = vld [vmem:[#allocation5 + $0x78] sm:$0xff]
    %v1547 = vld [vmem:[#allocation5 + $0x80] sm:$0xff]
    %v1548 = vld [vmem:[#allocation5 + $0x88] sm:$0xff]
    %v1549 = vld [vmem:[#allocation5 + $0x90] sm:$0xff]
    %v1550 = vld [vmem:[#allocation5 + $0x98] sm:$0xff]
    %v1551 = vld [vmem:[#allocation5 + $0xa0] sm:$0xff]
    %v1552 = vld [vmem:[#allocation5 + $0xa8] sm:$0xff]
    %v1553 = vld [vmem:[#allocation5 + $0xb0] sm:$0xff]
    %v1554 = vld [vmem:[#allocation5 + $0xb8] sm:$0xff]
    %v1555 = vld [vmem:[#allocation7] sm:$0xff]
    %v1556 = vld [vmem:[#allocation7 + $0x8] sm:$0xff]
    %v1557 = vld [vmem:[#allocation7 + $0x10] sm:$0xff]
    %v1558 = vld [vmem:[#allocation7 + $0x18] sm:$0xff]
    %v1559 = vld [vmem:[#allocation7 + $0x20] sm:$0xff]
    %v1560 = vld [vmem:[#allocation7 + $0x28] sm:$0xff]
    %v1561 = vld [vmem:[#allocation7 + $0x30] sm:$0xff]
    %v1562 = vld [vmem:[#allocation7 + $0x38] sm:$0xff]
    %v1563 = vld [vmem:[#allocation7 + $0x40] sm:$0xff]
    %v1564 = vld [vmem:[#allocation7 + $0x48] sm:$0xff]
    %v1565 = vld [vmem:[#allocation7 + $0x50] sm:$0xff]
    %v1566 = vld [vmem:[#allocation7 + $0x58] sm:$0xff]
    %v1567 = vld [vmem:[#allocation7 + $0x60] sm:$0xff]
    %v1568 = vld [vmem:[#allocation7 + $0x68] sm:$0xff]
    %v1569 = vld [vmem:[#allocation7 + $0x70] sm:$0xff]
    %v1570 = vld [vmem:[#allocation7 + $0x78] sm:$0xff]
    %v1571 = vld [vmem:[#allocation7 + $0x80] sm:$0xff]
    %v1572 = vld [vmem:[#allocation7 + $0x88] sm:$0xff]
    %v1573 = vld [vmem:[#allocation7 + $0x90] sm:$0xff]
    %v1574 = vld [vmem:[#allocation7 + $0x98] sm:$0xff]
    %v1575 = vld [vmem:[#allocation7 + $0xa0] sm:$0xff]
    %v1576 = vld [vmem:[#allocation7 + $0xa8] sm:$0xff]
    %v1577 = vld [vmem:[#allocation7 + $0xb0] sm:$0xff]
    %v1578 = vld [vmem:[#allocation7 + $0xb8] sm:$0xff]
    %v1603 = vunpack.c.l.b16 %v1555
    %v1604 = vunpack.c.h.b16 %v1555
    %v1605 = vunpack.c.l.b16 %v1556
    %v1606 = vunpack.c.h.b16 %v1556
    %v1607 = vunpack.c.l.b16 %v1557
    %v1608 = vunpack.c.h.b16 %v1557
    %v1609 = vunpack.c.l.b16 %v1558
    %v1610 = vunpack.c.h.b16 %v1558
    %v1611 = vunpack.c.l.b16 %v1559
    %v1612 = vunpack.c.h.b16 %v1559
    %v1613 = vunpack.c.l.b16 %v1560
    %v1614 = vunpack.c.h.b16 %v1560
    %v1615 = vunpack.c.l.b16 %v1561
    %v1616 = vunpack.c.h.b16 %v1561
    %v1617 = vunpack.c.l.b16 %v1562
    %v1618 = vunpack.c.h.b16 %v1562
    %v1619 = vunpack.c.l.b16 %v1563
    %v1620 = vunpack.c.h.b16 %v1563
    %v1621 = vunpack.c.l.b16 %v1564
    %v1622 = vunpack.c.h.b16 %v1564
    %v1623 = vunpack.c.l.b16 %v1565
    %v1624 = vunpack.c.h.b16 %v1565
    %v1625 = vunpack.c.l.b16 %v1566
    %v1626 = vunpack.c.h.b16 %v1566
    %v1627 = vunpack.c.l.b16 %v1567
    %v1628 = vunpack.c.h.b16 %v1567
    %v1629 = vunpack.c.l.b16 %v1568
    %v1630 = vunpack.c.h.b16 %v1568
    %v1631 = vunpack.c.l.b16 %v1569
    %v1632 = vunpack.c.h.b16 %v1569
    %v1633 = vunpack.c.l.b16 %v1570
    %v1634 = vunpack.c.h.b16 %v1570
    %v1635 = vunpack.c.l.b16 %v1571
    %v1636 = vunpack.c.h.b16 %v1571
    %v1637 = vunpack.c.l.b16 %v1572
    %v1638 = vunpack.c.h.b16 %v1572
    %v1639 = vunpack.c.l.b16 %v1573
    %v1640 = vunpack.c.h.b16 %v1573
    %v1641 = vunpack.c.l.b16 %v1574
    %v1642 = vunpack.c.h.b16 %v1574
    %v1643 = vunpack.c.l.b16 %v1575
    %v1644 = vunpack.c.h.b16 %v1575
    %v1645 = vunpack.c.l.b16 %v1576
    %v1646 = vunpack.c.h.b16 %v1576
    %v1647 = vunpack.c.l.b16 %v1577
    %v1648 = vunpack.c.h.b16 %v1577
    %v1649 = vunpack.c.l.b16 %v1578
    %v1650 = vunpack.c.h.b16 %v1578
    %v1651 = vpack.c.b16 %v1611, %v1603
    %v1652 = vpack.c.b16 %v1612, %v1604
    %v1653 = vpack.c.b16 %v1613, %v1605
    %v1654 = vpack.c.b16 %v1614, %v1606
    %v1655 = vpack.c.b16 %v1615, %v1607
    %v1656 = vpack.c.b16 %v1616, %v1608
    %v1657 = vpack.c.b16 %v1617, %v1609
    %v1658 = vpack.c.b16 %v1618, %v1610
    %v1659 = vpack.c.b16 %v1627, %v1619
    %v1660 = vpack.c.b16 %v1628, %v1620
    %v1661 = vpack.c.b16 %v1629, %v1621
    %v1662 = vpack.c.b16 %v1630, %v1622
    %v1663 = vpack.c.b16 %v1631, %v1623
    %v1664 = vpack.c.b16 %v1632, %v1624
    %v1665 = vpack.c.b16 %v1633, %v1625
    %v1666 = vpack.c.b16 %v1634, %v1626
    %v1667 = vpack.c.b16 %v1643, %v1635
    %v1668 = vpack.c.b16 %v1644, %v1636
    %v1669 = vpack.c.b16 %v1645, %v1637
    %v1670 = vpack.c.b16 %v1646, %v1638
    %v1671 = vpack.c.b16 %v1647, %v1639
    %v1672 = vpack.c.b16 %v1648, %v1640
    %v1673 = vpack.c.b16 %v1649, %v1641
    %v1674 = vpack.c.b16 %v1650, %v1642
    %vm1696 = vcmask 531456
    %v1698 = vsel %vm1696, %v1658, 0
    %v1701 = vsel %vm1696, %v1666, 0
    %v1704 = vsel %vm1696, %v1674, 0
    %vm1706 = vcmask 1040384
    %v1707 = vsel 0, 4294967295, 65535
    %v1708 = vsel %vm1706, %v1707, 0
    %v1710 = vand.u32 %v1529, %v1708
    %v1713 = vand.u32 %v1530, %v1708
    %1715 = vmatpush.bf16.msra.mxu0 %v1423
    %1716 = vmatpush.bf16.msra.mxu0 %v1421
    %1717 = vmatpush.bf16.msra.mxu0 %v1419
    %1718 = vmatpush.bf16.msra.mxu0 %v1417
    %1719 = vmatpush.bf16.msra.mxu0 %v1415
    %1720 = vmatpush.bf16.msra.mxu0 %v1413
    %1721 = vmatpush.bf16.msra.mxu0 %v1411
    %1722 = vmatpush.bf16.msra.mxu0 %v1409
    %1723 = vmatmul.bf16.gmra.mxu0 %v1651
    %v1724 = vpop.f32.mrf.mxu0
    %v1725 = vadd.f32 0.0, %v1724
    %v1726 = vpop.f32.mrf.mxu0
    %v1727 = vadd.f32 0.0, %v1726
    %1728 = vmatmul.bf16.gmra.mxu0 %v1659
    %v1729 = vpop.f32.mrf.mxu0
    %v1730 = vadd.f32 0.0, %v1729
    %v1731 = vpop.f32.mrf.mxu0
    %v1732 = vadd.f32 0.0, %v1731
    %1733 = vmatmul.bf16.gmra.mxu0 %v1667
    %v1734 = vpop.f32.mrf.mxu0
    %v1735 = vadd.f32 0.0, %v1734
    %v1736 = vpop.f32.mrf.mxu0
    %v1737 = vadd.f32 0.0, %v1736
    %1738 = vdwg.mxu0
    %1739 = vmatpush.bf16.msra.mxu0 %v1439
    %1740 = vmatpush.bf16.msra.mxu0 %v1437
    %1741 = vmatpush.bf16.msra.mxu0 %v1435
    %1742 = vmatpush.bf16.msra.mxu0 %v1433
    %1743 = vmatpush.bf16.msra.mxu0 %v1431
    %1744 = vmatpush.bf16.msra.mxu0 %v1429
    %1745 = vmatpush.bf16.msra.mxu0 %v1427
    %1746 = vmatpush.bf16.msra.mxu0 %v1425
    %1747 = vmatmul.bf16.gmra.mxu0 %v1652
    %v1748 = vpop.f32.mrf.mxu0
    %v1749 = vadd.f32 %v1725, %v1748
    %v1750 = vpop.f32.mrf.mxu0
    %v1751 = vadd.f32 %v1727, %v1750
    %1752 = vmatmul.bf16.gmra.mxu0 %v1660
    %v1753 = vpop.f32.mrf.mxu0
    %v1754 = vadd.f32 %v1730, %v1753
    %v1755 = vpop.f32.mrf.mxu0
    %v1756 = vadd.f32 %v1732, %v1755
    %1757 = vmatmul.bf16.gmra.mxu0 %v1668
    %v1758 = vpop.f32.mrf.mxu0
    %v1759 = vadd.f32 %v1735, %v1758
    %v1760 = vpop.f32.mrf.mxu0
    %v1761 = vadd.f32 %v1737, %v1760
    %1762 = vdwg.mxu0
    %1763 = vmatpush.bf16.msra.mxu0 %v1455
    %1764 = vmatpush.bf16.msra.mxu0 %v1453
    %1765 = vmatpush.bf16.msra.mxu0 %v1451
    %1766 = vmatpush.bf16.msra.mxu0 %v1449
    %1767 = vmatpush.bf16.msra.mxu0 %v1447
    %1768 = vmatpush.bf16.msra.mxu0 %v1445
    %1769 = vmatpush.bf16.msra.mxu0 %v1443
    %1770 = vmatpush.bf16.msra.mxu0 %v1441
    %1771 = vmatmul.bf16.gmra.mxu0 %v1653
    %v1772 = vpop.f32.mrf.mxu0
    %v1773 = vadd.f32 %v1749, %v1772
    %v1774 = vpop.f32.mrf.mxu0
    %v1775 = vadd.f32 %v1751, %v1774
    %1776 = vmatmul.bf16.gmra.mxu0 %v1661
    %v1777 = vpop.f32.mrf.mxu0
    %v1778 = vadd.f32 %v1754, %v1777
    %v1779 = vpop.f32.mrf.mxu0
    %v1780 = vadd.f32 %v1756, %v1779
    %1781 = vmatmul.bf16.gmra.mxu0 %v1669
    %v1782 = vpop.f32.mrf.mxu0
    %v1783 = vadd.f32 %v1759, %v1782
    %v1784 = vpop.f32.mrf.mxu0
    %v1785 = vadd.f32 %v1761, %v1784
    %1786 = vdwg.mxu0
    %1787 = vmatpush.bf16.msra.mxu0 %v1471
    %1788 = vmatpush.bf16.msra.mxu0 %v1469
    %1789 = vmatpush.bf16.msra.mxu0 %v1467
    %1790 = vmatpush.bf16.msra.mxu0 %v1465
    %1791 = vmatpush.bf16.msra.mxu0 %v1463
    %1792 = vmatpush.bf16.msra.mxu0 %v1461
    %1793 = vmatpush.bf16.msra.mxu0 %v1459
    %1794 = vmatpush.bf16.msra.mxu0 %v1457
    %1795 = vmatmul.bf16.gmra.mxu0 %v1654
    %v1796 = vpop.f32.mrf.mxu0
    %v1797 = vadd.f32 %v1773, %v1796
    %v1798 = vpop.f32.mrf.mxu0
    %v1799 = vadd.f32 %v1775, %v1798
    %1800 = vmatmul.bf16.gmra.mxu0 %v1662
    %v1801 = vpop.f32.mrf.mxu0
    %v1802 = vadd.f32 %v1778, %v1801
    %v1803 = vpop.f32.mrf.mxu0
    %v1804 = vadd.f32 %v1780, %v1803
    %1805 = vmatmul.bf16.gmra.mxu0 %v1670
    %v1806 = vpop.f32.mrf.mxu0
    %v1807 = vadd.f32 %v1783, %v1806
    %v1808 = vpop.f32.mrf.mxu0
    %v1809 = vadd.f32 %v1785, %v1808
    %1810 = vdwg.mxu0
    %1811 = vmatpush.bf16.msra.mxu0 %v1487
    %1812 = vmatpush.bf16.msra.mxu0 %v1485
    %1813 = vmatpush.bf16.msra.mxu0 %v1483
    %1814 = vmatpush.bf16.msra.mxu0 %v1481
    %1815 = vmatpush.bf16.msra.mxu0 %v1479
    %1816 = vmatpush.bf16.msra.mxu0 %v1477
    %1817 = vmatpush.bf16.msra.mxu0 %v1475
    %1818 = vmatpush.bf16.msra.mxu0 %v1473
    %1819 = vmatmul.bf16.gmra.mxu0 %v1655
    %v1820 = vpop.f32.mrf.mxu0
    %v1821 = vadd.f32 %v1797, %v1820
    %v1822 = vpop.f32.mrf.mxu0
    %v1823 = vadd.f32 %v1799, %v1822
    %1824 = vmatmul.bf16.gmra.mxu0 %v1663
    %v1825 = vpop.f32.mrf.mxu0
    %v1826 = vadd.f32 %v1802, %v1825
    %v1827 = vpop.f32.mrf.mxu0
    %v1828 = vadd.f32 %v1804, %v1827
    %1829 = vmatmul.bf16.gmra.mxu0 %v1671
    %v1830 = vpop.f32.mrf.mxu0
    %v1831 = vadd.f32 %v1807, %v1830
    %v1832 = vpop.f32.mrf.mxu0
    %v1833 = vadd.f32 %v1809, %v1832
    %1834 = vdwg.mxu0
    %1835 = vmatpush.bf16.msra.mxu0 %v1503
    %1836 = vmatpush.bf16.msra.mxu0 %v1501
    %1837 = vmatpush.bf16.msra.mxu0 %v1499
    %1838 = vmatpush.bf16.msra.mxu0 %v1497
    %1839 = vmatpush.bf16.msra.mxu0 %v1495
    %1840 = vmatpush.bf16.msra.mxu0 %v1493
    %1841 = vmatpush.bf16.msra.mxu0 %v1491
    %1842 = vmatpush.bf16.msra.mxu0 %v1489
    %1843 = vmatmul.bf16.gmra.mxu0 %v1656
    %v1844 = vpop.f32.mrf.mxu0
    %v1845 = vadd.f32 %v1821, %v1844
    %v1846 = vpop.f32.mrf.mxu0
    %v1847 = vadd.f32 %v1823, %v1846
    %1848 = vmatmul.bf16.gmra.mxu0 %v1664
    %v1849 = vpop.f32.mrf.mxu0
    %v1850 = vadd.f32 %v1826, %v1849
    %v1851 = vpop.f32.mrf.mxu0
    %v1852 = vadd.f32 %v1828, %v1851
    %1853 = vmatmul.bf16.gmra.mxu0 %v1672
    %v1854 = vpop.f32.mrf.mxu0
    %v1855 = vadd.f32 %v1831, %v1854
    %v1856 = vpop.f32.mrf.mxu0
    %v1857 = vadd.f32 %v1833, %v1856
    %1858 = vdwg.mxu0
    %1859 = vmatpush.bf16.msra.mxu0 %v1519
    %1860 = vmatpush.bf16.msra.mxu0 %v1517
    %1861 = vmatpush.bf16.msra.mxu0 %v1515
    %1862 = vmatpush.bf16.msra.mxu0 %v1513
    %1863 = vmatpush.bf16.msra.mxu0 %v1511
    %1864 = vmatpush.bf16.msra.mxu0 %v1509
    %1865 = vmatpush.bf16.msra.mxu0 %v1507
    %1866 = vmatpush.bf16.msra.mxu0 %v1505
    %1867 = vmatmul.bf16.gmra.mxu0 %v1657
    %v1868 = vpop.f32.mrf.mxu0
    %v1869 = vadd.f32 %v1845, %v1868
    %v1870 = vpop.f32.mrf.mxu0
    %v1871 = vadd.f32 %v1847, %v1870
    %1872 = vmatmul.bf16.gmra.mxu0 %v1665
    %v1873 = vpop.f32.mrf.mxu0
    %v1874 = vadd.f32 %v1850, %v1873
    %v1875 = vpop.f32.mrf.mxu0
    %v1876 = vadd.f32 %v1852, %v1875
    %1877 = vmatmul.bf16.gmra.mxu0 %v1673
    %v1878 = vpop.f32.mrf.mxu0
    %v1879 = vadd.f32 %v1855, %v1878
    %v1880 = vpop.f32.mrf.mxu0
    %v1881 = vadd.f32 %v1857, %v1880
    %1882 = vdwg.mxu0
    %1883 = vmatpush.bf16.msra.mxu0 0
    %1884 = vmatpush.bf16.msra.mxu0 0
    %1885 = vmatpush.bf16.msra.mxu0 0
    %1886 = vmatpush.bf16.msra.mxu0 %v1710
    %1887 = vmatpush.bf16.msra.mxu0 %v1527
    %1888 = vmatpush.bf16.msra.mxu0 %v1525
    %1889 = vmatpush.bf16.msra.mxu0 %v1523
    %1890 = vmatpush.bf16.msra.mxu0 %v1521
    %1891 = vmatmul.bf16.gmra.mxu0 %v1698
    %v1892 = vpop.f32.mrf.mxu0
    %v1893 = vadd.f32 %v1869, %v1892
    %v1894 = vpop.f32.mrf.mxu0
    %v1895 = vadd.f32 %v1871, %v1894
    %1896 = vmatmul.bf16.gmra.mxu0 %v1701
    %v1897 = vpop.f32.mrf.mxu0
    %v1898 = vadd.f32 %v1874, %v1897
    %v1899 = vpop.f32.mrf.mxu0
    %v1900 = vadd.f32 %v1876, %v1899
    %1901 = vmatmul.bf16.gmra.mxu0 %v1704
    %v1902 = vpop.f32.mrf.mxu0
    %v1903 = vadd.f32 %v1879, %v1902
    %v1904 = vpop.f32.mrf.mxu0
    %v1905 = vadd.f32 %v1881, %v1904
    %1906 = vdwg.mxu0
    %1907 = vmatpush.bf16.msra.mxu0 %v1424
    %1908 = vmatpush.bf16.msra.mxu0 %v1422
    %1909 = vmatpush.bf16.msra.mxu0 %v1420
    %1910 = vmatpush.bf16.msra.mxu0 %v1418
    %1911 = vmatpush.bf16.msra.mxu0 %v1416
    %1912 = vmatpush.bf16.msra.mxu0 %v1414
    %1913 = vmatpush.bf16.msra.mxu0 %v1412
    %1914 = vmatpush.bf16.msra.mxu0 %v1410
    %1915 = vmatmul.bf16.gmra.mxu0 %v1651
    %v1916 = vpop.f32.mrf.mxu0
    %v1917 = vadd.f32 0.0, %v1916
    %v1918 = vpop.f32.mrf.mxu0
    %v1919 = vadd.f32 0.0, %v1918
    %1920 = vmatmul.bf16.gmra.mxu0 %v1659
    %v1921 = vpop.f32.mrf.mxu0
    %v1922 = vadd.f32 0.0, %v1921
    %v1923 = vpop.f32.mrf.mxu0
    %v1924 = vadd.f32 0.0, %v1923
    %1925 = vmatmul.bf16.gmra.mxu0 %v1667
    %v1926 = vpop.f32.mrf.mxu0
    %v1927 = vadd.f32 0.0, %v1926
    %v1928 = vpop.f32.mrf.mxu0
    %v1929 = vadd.f32 0.0, %v1928
    %1930 = vdwg.mxu0
    %1931 = vmatpush.bf16.msra.mxu0 %v1440
    %1932 = vmatpush.bf16.msra.mxu0 %v1438
    %1933 = vmatpush.bf16.msra.mxu0 %v1436
    %1934 = vmatpush.bf16.msra.mxu0 %v1434
    %1935 = vmatpush.bf16.msra.mxu0 %v1432
    %1936 = vmatpush.bf16.msra.mxu0 %v1430
    %1937 = vmatpush.bf16.msra.mxu0 %v1428
    %1938 = vmatpush.bf16.msra.mxu0 %v1426
    %1939 = vmatmul.bf16.gmra.mxu0 %v1652
    %v1940 = vpop.f32.mrf.mxu0
    %v1941 = vadd.f32 %v1917, %v1940
    %v1942 = vpop.f32.mrf.mxu0
    %v1943 = vadd.f32 %v1919, %v1942
    %1944 = vmatmul.bf16.gmra.mxu0 %v1660
    %v1945 = vpop.f32.mrf.mxu0
    %v1946 = vadd.f32 %v1922, %v1945
    %v1947 = vpop.f32.mrf.mxu0
    %v1948 = vadd.f32 %v1924, %v1947
    %1949 = vmatmul.bf16.gmra.mxu0 %v1668
    %v1950 = vpop.f32.mrf.mxu0
    %v1951 = vadd.f32 %v1927, %v1950
    %v1952 = vpop.f32.mrf.mxu0
    %v1953 = vadd.f32 %v1929, %v1952
    %1954 = vdwg.mxu0
    %1955 = vmatpush.bf16.msra.mxu0 %v1456
    %1956 = vmatpush.bf16.msra.mxu0 %v1454
    %1957 = vmatpush.bf16.msra.mxu0 %v1452
    %1958 = vmatpush.bf16.msra.mxu0 %v1450
    %1959 = vmatpush.bf16.msra.mxu0 %v1448
    %1960 = vmatpush.bf16.msra.mxu0 %v1446
    %1961 = vmatpush.bf16.msra.mxu0 %v1444
    %1962 = vmatpush.bf16.msra.mxu0 %v1442
    %1963 = vmatmul.bf16.gmra.mxu0 %v1653
    %v1964 = vpop.f32.mrf.mxu0
    %v1965 = vadd.f32 %v1941, %v1964
    %v1966 = vpop.f32.mrf.mxu0
    %v1967 = vadd.f32 %v1943, %v1966
    %1968 = vmatmul.bf16.gmra.mxu0 %v1661
    %v1969 = vpop.f32.mrf.mxu0
    %v1970 = vadd.f32 %v1946, %v1969
    %v1971 = vpop.f32.mrf.mxu0
    %v1972 = vadd.f32 %v1948, %v1971
    %1973 = vmatmul.bf16.gmra.mxu0 %v1669
    %v1974 = vpop.f32.mrf.mxu0
    %v1975 = vadd.f32 %v1951, %v1974
    %v1976 = vpop.f32.mrf.mxu0
    %v1977 = vadd.f32 %v1953, %v1976
    %1978 = vdwg.mxu0
    %1979 = vmatpush.bf16.msra.mxu0 %v1472
    %1980 = vmatpush.bf16.msra.mxu0 %v1470
    %1981 = vmatpush.bf16.msra.mxu0 %v1468
    %1982 = vmatpush.bf16.msra.mxu0 %v1466
    %1983 = vmatpush.bf16.msra.mxu0 %v1464
    %1984 = vmatpush.bf16.msra.mxu0 %v1462
    %1985 = vmatpush.bf16.msra.mxu0 %v1460
    %1986 = vmatpush.bf16.msra.mxu0 %v1458
    %1987 = vmatmul.bf16.gmra.mxu0 %v1654
    %v1988 = vpop.f32.mrf.mxu0
    %v1989 = vadd.f32 %v1965, %v1988
    %v1990 = vpop.f32.mrf.mxu0
    %v1991 = vadd.f32 %v1967, %v1990
    %1992 = vmatmul.bf16.gmra.mxu0 %v1662
    %v1993 = vpop.f32.mrf.mxu0
    %v1994 = vadd.f32 %v1970, %v1993
    %v1995 = vpop.f32.mrf.mxu0
    %v1996 = vadd.f32 %v1972, %v1995
    %1997 = vmatmul.bf16.gmra.mxu0 %v1670
    %v1998 = vpop.f32.mrf.mxu0
    %v1999 = vadd.f32 %v1975, %v1998
    %v2000 = vpop.f32.mrf.mxu0
    %v2001 = vadd.f32 %v1977, %v2000
    %2002 = vdwg.mxu0
    %2003 = vmatpush.bf16.msra.mxu0 %v1488
    %2004 = vmatpush.bf16.msra.mxu0 %v1486
    %2005 = vmatpush.bf16.msra.mxu0 %v1484
    %2006 = vmatpush.bf16.msra.mxu0 %v1482
    %2007 = vmatpush.bf16.msra.mxu0 %v1480
    %2008 = vmatpush.bf16.msra.mxu0 %v1478
    %2009 = vmatpush.bf16.msra.mxu0 %v1476
    %2010 = vmatpush.bf16.msra.mxu0 %v1474
    %2011 = vmatmul.bf16.gmra.mxu0 %v1655
    %v2012 = vpop.f32.mrf.mxu0
    %v2013 = vadd.f32 %v1989, %v2012
    %v2014 = vpop.f32.mrf.mxu0
    %v2015 = vadd.f32 %v1991, %v2014
    %2016 = vmatmul.bf16.gmra.mxu0 %v1663
    %v2017 = vpop.f32.mrf.mxu0
    %v2018 = vadd.f32 %v1994, %v2017
    %v2019 = vpop.f32.mrf.mxu0
    %v2020 = vadd.f32 %v1996, %v2019
    %2021 = vmatmul.bf16.gmra.mxu0 %v1671
    %v2022 = vpop.f32.mrf.mxu0
    %v2023 = vadd.f32 %v1999, %v2022
    %v2024 = vpop.f32.mrf.mxu0
    %v2025 = vadd.f32 %v2001, %v2024
    %2026 = vdwg.mxu0
    %2027 = vmatpush.bf16.msra.mxu0 %v1504
    %2028 = vmatpush.bf16.msra.mxu0 %v1502
    %2029 = vmatpush.bf16.msra.mxu0 %v1500
    %2030 = vmatpush.bf16.msra.mxu0 %v1498
    %2031 = vmatpush.bf16.msra.mxu0 %v1496
    %2032 = vmatpush.bf16.msra.mxu0 %v1494
    %2033 = vmatpush.bf16.msra.mxu0 %v1492
    %2034 = vmatpush.bf16.msra.mxu0 %v1490
    %2035 = vmatmul.bf16.gmra.mxu0 %v1656
    %v2036 = vpop.f32.mrf.mxu0
    %v2037 = vadd.f32 %v2013, %v2036
    %v2038 = vpop.f32.mrf.mxu0
    %v2039 = vadd.f32 %v2015, %v2038
    %2040 = vmatmul.bf16.gmra.mxu0 %v1664
    %v2041 = vpop.f32.mrf.mxu0
    %v2042 = vadd.f32 %v2018, %v2041
    %v2043 = vpop.f32.mrf.mxu0
    %v2044 = vadd.f32 %v2020, %v2043
    %2045 = vmatmul.bf16.gmra.mxu0 %v1672
    %v2046 = vpop.f32.mrf.mxu0
    %v2047 = vadd.f32 %v2023, %v2046
    %v2048 = vpop.f32.mrf.mxu0
    %v2049 = vadd.f32 %v2025, %v2048
    %2050 = vdwg.mxu0
    %2051 = vmatpush.bf16.msra.mxu0 %v1520
    %2052 = vmatpush.bf16.msra.mxu0 %v1518
    %2053 = vmatpush.bf16.msra.mxu0 %v1516
    %2054 = vmatpush.bf16.msra.mxu0 %v1514
    %2055 = vmatpush.bf16.msra.mxu0 %v1512
    %2056 = vmatpush.bf16.msra.mxu0 %v1510
    %2057 = vmatpush.bf16.msra.mxu0 %v1508
    %2058 = vmatpush.bf16.msra.mxu0 %v1506
    %2059 = vmatmul.bf16.gmra.mxu0 %v1657
    %v2060 = vpop.f32.mrf.mxu0
    %v2061 = vadd.f32 %v2037, %v2060
    %v2062 = vpop.f32.mrf.mxu0
    %v2063 = vadd.f32 %v2039, %v2062
    %2064 = vmatmul.bf16.gmra.mxu0 %v1665
    %v2065 = vpop.f32.mrf.mxu0
    %v2066 = vadd.f32 %v2042, %v2065
    %v2067 = vpop.f32.mrf.mxu0
    %v2068 = vadd.f32 %v2044, %v2067
    %2069 = vmatmul.bf16.gmra.mxu0 %v1673
    %v2070 = vpop.f32.mrf.mxu0
    %v2071 = vadd.f32 %v2047, %v2070
    %v2072 = vpop.f32.mrf.mxu0
    %v2073 = vadd.f32 %v2049, %v2072
    %2074 = vdwg.mxu0
    %2075 = vmatpush.bf16.msra.mxu0 0
    %2076 = vmatpush.bf16.msra.mxu0 0
    %2077 = vmatpush.bf16.msra.mxu0 0
    %2078 = vmatpush.bf16.msra.mxu0 %v1713
    %2079 = vmatpush.bf16.msra.mxu0 %v1528
    %2080 = vmatpush.bf16.msra.mxu0 %v1526
    %2081 = vmatpush.bf16.msra.mxu0 %v1524
    %2082 = vmatpush.bf16.msra.mxu0 %v1522
    %2083 = vmatmul.bf16.gmra.mxu0 %v1698
    %v2084 = vpop.f32.mrf.mxu0
    %v2085 = vadd.f32 %v2061, %v2084
    %v2086 = vpop.f32.mrf.mxu0
    %v2087 = vadd.f32 %v2063, %v2086
    %2088 = vmatmul.bf16.gmra.mxu0 %v1701
    %v2089 = vpop.f32.mrf.mxu0
    %v2090 = vadd.f32 %v2066, %v2089
    %v2091 = vpop.f32.mrf.mxu0
    %v2092 = vadd.f32 %v2068, %v2091
    %2093 = vmatmul.bf16.gmra.mxu0 %v1704
    %v2094 = vpop.f32.mrf.mxu0
    %v2095 = vadd.f32 %v2071, %v2094
    %v2096 = vpop.f32.mrf.mxu0
    %v2097 = vadd.f32 %v2073, %v2096
    %2098 = vdwg.mxu0
    %v2123 = vunpack.c.l.b16 %v1531
    %v2124 = vunpack.c.h.b16 %v1531
    %v2125 = vunpack.c.l.b16 %v1532
    %v2126 = vunpack.c.h.b16 %v1532
    %v2127 = vunpack.c.l.b16 %v1533
    %v2128 = vunpack.c.h.b16 %v1533
    %v2129 = vunpack.c.l.b16 %v1534
    %v2130 = vunpack.c.h.b16 %v1534
    %v2131 = vunpack.c.l.b16 %v1535
    %v2132 = vunpack.c.h.b16 %v1535
    %v2133 = vunpack.c.l.b16 %v1536
    %v2134 = vunpack.c.h.b16 %v1536
    %v2135 = vunpack.c.l.b16 %v1537
    %v2136 = vunpack.c.h.b16 %v1537
    %v2137 = vunpack.c.l.b16 %v1538
    %v2138 = vunpack.c.h.b16 %v1538
    %v2139 = vunpack.c.l.b16 %v1539
    %v2140 = vunpack.c.h.b16 %v1539
    %v2141 = vunpack.c.l.b16 %v1540
    %v2142 = vunpack.c.h.b16 %v1540
    %v2143 = vunpack.c.l.b16 %v1541
    %v2144 = vunpack.c.h.b16 %v1541
    %v2145 = vunpack.c.l.b16 %v1542
    %v2146 = vunpack.c.h.b16 %v1542
    %v2147 = vunpack.c.l.b16 %v1543
    %v2148 = vunpack.c.h.b16 %v1543
    %v2149 = vunpack.c.l.b16 %v1544
    %v2150 = vunpack.c.h.b16 %v1544
    %v2151 = vunpack.c.l.b16 %v1545
    %v2152 = vunpack.c.h.b16 %v1545
    %v2153 = vunpack.c.l.b16 %v1546
    %v2154 = vunpack.c.h.b16 %v1546
    %v2155 = vunpack.c.l.b16 %v1547
    %v2156 = vunpack.c.h.b16 %v1547
    %v2157 = vunpack.c.l.b16 %v1548
    %v2158 = vunpack.c.h.b16 %v1548
    %v2159 = vunpack.c.l.b16 %v1549
    %v2160 = vunpack.c.h.b16 %v1549
    %v2161 = vunpack.c.l.b16 %v1550
    %v2162 = vunpack.c.h.b16 %v1550
    %v2163 = vunpack.c.l.b16 %v1551
    %v2164 = vunpack.c.h.b16 %v1551
    %v2165 = vunpack.c.l.b16 %v1552
    %v2166 = vunpack.c.h.b16 %v1552
    %v2167 = vunpack.c.l.b16 %v1553
    %v2168 = vunpack.c.h.b16 %v1553
    %v2169 = vunpack.c.l.b16 %v1554
    %v2170 = vunpack.c.h.b16 %v1554
    %v2171 = vpack.c.b16 %v2131, %v2123
    %v2172 = vpack.c.b16 %v2132, %v2124
    %v2173 = vpack.c.b16 %v2133, %v2125
    %v2174 = vpack.c.b16 %v2134, %v2126
    %v2175 = vpack.c.b16 %v2135, %v2127
    %v2176 = vpack.c.b16 %v2136, %v2128
    %v2177 = vpack.c.b16 %v2137, %v2129
    %v2178 = vpack.c.b16 %v2138, %v2130
    %v2179 = vpack.c.b16 %v2147, %v2139
    %v2180 = vpack.c.b16 %v2148, %v2140
    %v2181 = vpack.c.b16 %v2149, %v2141
    %v2182 = vpack.c.b16 %v2150, %v2142
    %v2183 = vpack.c.b16 %v2151, %v2143
    %v2184 = vpack.c.b16 %v2152, %v2144
    %v2185 = vpack.c.b16 %v2153, %v2145
    %v2186 = vpack.c.b16 %v2154, %v2146
    %v2187 = vpack.c.b16 %v2163, %v2155
    %v2188 = vpack.c.b16 %v2164, %v2156
    %v2189 = vpack.c.b16 %v2165, %v2157
    %v2190 = vpack.c.b16 %v2166, %v2158
    %v2191 = vpack.c.b16 %v2167, %v2159
    %v2192 = vpack.c.b16 %v2168, %v2160
    %v2193 = vpack.c.b16 %v2169, %v2161
    %v2194 = vpack.c.b16 %v2170, %v2162
    %v2217 = vsel %vm1696, %v2178, 0
    %v2220 = vsel %vm1696, %v2186, 0
    %v2223 = vsel %vm1696, %v2194, 0
    %2225 = vmatpush.bf16.msra.mxu0 %v1423
    %2226 = vmatpush.bf16.msra.mxu0 %v1421
    %2227 = vmatpush.bf16.msra.mxu0 %v1419
    %2228 = vmatpush.bf16.msra.mxu0 %v1417
    %2229 = vmatpush.bf16.msra.mxu0 %v1415
    %2230 = vmatpush.bf16.msra.mxu0 %v1413
    %2231 = vmatpush.bf16.msra.mxu0 %v1411
    %2232 = vmatpush.bf16.msra.mxu0 %v1409
    %2233 = vmatmul.bf16.gmra.mxu0 %v2171
    %v2234 = vpop.f32.mrf.mxu0
    %v2235 = vadd.f32 %v1893, %v2234
    %v2236 = vpop.f32.mrf.mxu0
    %v2237 = vadd.f32 %v1895, %v2236
    %2238 = vmatmul.bf16.gmra.mxu0 %v2179
    %v2239 = vpop.f32.mrf.mxu0
    %v2240 = vadd.f32 %v1898, %v2239
    %v2241 = vpop.f32.mrf.mxu0
    %v2242 = vadd.f32 %v1900, %v2241
    %2243 = vmatmul.bf16.gmra.mxu0 %v2187
    %v2244 = vpop.f32.mrf.mxu0
    %v2245 = vadd.f32 %v1903, %v2244
    %v2246 = vpop.f32.mrf.mxu0
    %v2247 = vadd.f32 %v1905, %v2246
    %2248 = vdwg.mxu0
    %2249 = vmatpush.bf16.msra.mxu0 %v1439
    %2250 = vmatpush.bf16.msra.mxu0 %v1437
    %2251 = vmatpush.bf16.msra.mxu0 %v1435
    %2252 = vmatpush.bf16.msra.mxu0 %v1433
    %2253 = vmatpush.bf16.msra.mxu0 %v1431
    %2254 = vmatpush.bf16.msra.mxu0 %v1429
    %2255 = vmatpush.bf16.msra.mxu0 %v1427
    %2256 = vmatpush.bf16.msra.mxu0 %v1425
    %2257 = vmatmul.bf16.gmra.mxu0 %v2172
    %v2258 = vpop.f32.mrf.mxu0
    %v2259 = vadd.f32 %v2235, %v2258
    %v2260 = vpop.f32.mrf.mxu0
    %v2261 = vadd.f32 %v2237, %v2260
    %2262 = vmatmul.bf16.gmra.mxu0 %v2180
    %v2263 = vpop.f32.mrf.mxu0
    %v2264 = vadd.f32 %v2240, %v2263
    %v2265 = vpop.f32.mrf.mxu0
    %v2266 = vadd.f32 %v2242, %v2265
    %2267 = vmatmul.bf16.gmra.mxu0 %v2188
    %v2268 = vpop.f32.mrf.mxu0
    %v2269 = vadd.f32 %v2245, %v2268
    %v2270 = vpop.f32.mrf.mxu0
    %v2271 = vadd.f32 %v2247, %v2270
    %2272 = vdwg.mxu0
    %2273 = vmatpush.bf16.msra.mxu0 %v1455
    %2274 = vmatpush.bf16.msra.mxu0 %v1453
    %2275 = vmatpush.bf16.msra.mxu0 %v1451
    %2276 = vmatpush.bf16.msra.mxu0 %v1449
    %2277 = vmatpush.bf16.msra.mxu0 %v1447
    %2278 = vmatpush.bf16.msra.mxu0 %v1445
    %2279 = vmatpush.bf16.msra.mxu0 %v1443
    %2280 = vmatpush.bf16.msra.mxu0 %v1441
    %2281 = vmatmul.bf16.gmra.mxu0 %v2173
    %v2282 = vpop.f32.mrf.mxu0
    %v2283 = vadd.f32 %v2259, %v2282
    %v2284 = vpop.f32.mrf.mxu0
    %v2285 = vadd.f32 %v2261, %v2284
    %2286 = vmatmul.bf16.gmra.mxu0 %v2181
    %v2287 = vpop.f32.mrf.mxu0
    %v2288 = vadd.f32 %v2264, %v2287
    %v2289 = vpop.f32.mrf.mxu0
    %v2290 = vadd.f32 %v2266, %v2289
    %2291 = vmatmul.bf16.gmra.mxu0 %v2189
    %v2292 = vpop.f32.mrf.mxu0
    %v2293 = vadd.f32 %v2269, %v2292
    %v2294 = vpop.f32.mrf.mxu0
    %v2295 = vadd.f32 %v2271, %v2294
    %2296 = vdwg.mxu0
    %2297 = vmatpush.bf16.msra.mxu0 %v1471
    %2298 = vmatpush.bf16.msra.mxu0 %v1469
    %2299 = vmatpush.bf16.msra.mxu0 %v1467
    %2300 = vmatpush.bf16.msra.mxu0 %v1465
    %2301 = vmatpush.bf16.msra.mxu0 %v1463
    %2302 = vmatpush.bf16.msra.mxu0 %v1461
    %2303 = vmatpush.bf16.msra.mxu0 %v1459
    %2304 = vmatpush.bf16.msra.mxu0 %v1457
    %2305 = vmatmul.bf16.gmra.mxu0 %v2174
    %v2306 = vpop.f32.mrf.mxu0
    %v2307 = vadd.f32 %v2283, %v2306
    %v2308 = vpop.f32.mrf.mxu0
    %v2309 = vadd.f32 %v2285, %v2308
    %2310 = vmatmul.bf16.gmra.mxu0 %v2182
    %v2311 = vpop.f32.mrf.mxu0
    %v2312 = vadd.f32 %v2288, %v2311
    %v2313 = vpop.f32.mrf.mxu0
    %v2314 = vadd.f32 %v2290, %v2313
    %2315 = vmatmul.bf16.gmra.mxu0 %v2190
    %v2316 = vpop.f32.mrf.mxu0
    %v2317 = vadd.f32 %v2293, %v2316
    %v2318 = vpop.f32.mrf.mxu0
    %v2319 = vadd.f32 %v2295, %v2318
    %2320 = vdwg.mxu0
    %2321 = vmatpush.bf16.msra.mxu0 %v1487
    %2322 = vmatpush.bf16.msra.mxu0 %v1485
    %2323 = vmatpush.bf16.msra.mxu0 %v1483
    %2324 = vmatpush.bf16.msra.mxu0 %v1481
    %2325 = vmatpush.bf16.msra.mxu0 %v1479
    %2326 = vmatpush.bf16.msra.mxu0 %v1477
    %2327 = vmatpush.bf16.msra.mxu0 %v1475
    %2328 = vmatpush.bf16.msra.mxu0 %v1473
    %2329 = vmatmul.bf16.gmra.mxu0 %v2175
    %v2330 = vpop.f32.mrf.mxu0
    %v2331 = vadd.f32 %v2307, %v2330
    %v2332 = vpop.f32.mrf.mxu0
    %v2333 = vadd.f32 %v2309, %v2332
    %2334 = vmatmul.bf16.gmra.mxu0 %v2183
    %v2335 = vpop.f32.mrf.mxu0
    %v2336 = vadd.f32 %v2312, %v2335
    %v2337 = vpop.f32.mrf.mxu0
    %v2338 = vadd.f32 %v2314, %v2337
    %2339 = vmatmul.bf16.gmra.mxu0 %v2191
    %v2340 = vpop.f32.mrf.mxu0
    %v2341 = vadd.f32 %v2317, %v2340
    %v2342 = vpop.f32.mrf.mxu0
    %v2343 = vadd.f32 %v2319, %v2342
    %2344 = vdwg.mxu0
    %2345 = vmatpush.bf16.msra.mxu0 %v1503
    %2346 = vmatpush.bf16.msra.mxu0 %v1501
    %2347 = vmatpush.bf16.msra.mxu0 %v1499
    %2348 = vmatpush.bf16.msra.mxu0 %v1497
    %2349 = vmatpush.bf16.msra.mxu0 %v1495
    %2350 = vmatpush.bf16.msra.mxu0 %v1493
    %2351 = vmatpush.bf16.msra.mxu0 %v1491
    %2352 = vmatpush.bf16.msra.mxu0 %v1489
    %2353 = vmatmul.bf16.gmra.mxu0 %v2176
    %v2354 = vpop.f32.mrf.mxu0
    %v2355 = vadd.f32 %v2331, %v2354
    %v2356 = vpop.f32.mrf.mxu0
    %v2357 = vadd.f32 %v2333, %v2356
    %2358 = vmatmul.bf16.gmra.mxu0 %v2184
    %v2359 = vpop.f32.mrf.mxu0
    %v2360 = vadd.f32 %v2336, %v2359
    %v2361 = vpop.f32.mrf.mxu0
    %v2362 = vadd.f32 %v2338, %v2361
    %2363 = vmatmul.bf16.gmra.mxu0 %v2192
    %v2364 = vpop.f32.mrf.mxu0
    %v2365 = vadd.f32 %v2341, %v2364
    %v2366 = vpop.f32.mrf.mxu0
    %v2367 = vadd.f32 %v2343, %v2366
    %2368 = vdwg.mxu0
    %2369 = vmatpush.bf16.msra.mxu0 %v1519
    %2370 = vmatpush.bf16.msra.mxu0 %v1517
    %2371 = vmatpush.bf16.msra.mxu0 %v1515
    %2372 = vmatpush.bf16.msra.mxu0 %v1513
    %2373 = vmatpush.bf16.msra.mxu0 %v1511
    %2374 = vmatpush.bf16.msra.mxu0 %v1509
    %2375 = vmatpush.bf16.msra.mxu0 %v1507
    %2376 = vmatpush.bf16.msra.mxu0 %v1505
    %2377 = vmatmul.bf16.gmra.mxu0 %v2177
    %v2378 = vpop.f32.mrf.mxu0
    %v2379 = vadd.f32 %v2355, %v2378
    %v2380 = vpop.f32.mrf.mxu0
    %v2381 = vadd.f32 %v2357, %v2380
    %2382 = vmatmul.bf16.gmra.mxu0 %v2185
    %v2383 = vpop.f32.mrf.mxu0
    %v2384 = vadd.f32 %v2360, %v2383
    %v2385 = vpop.f32.mrf.mxu0
    %v2386 = vadd.f32 %v2362, %v2385
    %2387 = vmatmul.bf16.gmra.mxu0 %v2193
    %v2388 = vpop.f32.mrf.mxu0
    %v2389 = vadd.f32 %v2365, %v2388
    %v2390 = vpop.f32.mrf.mxu0
    %v2391 = vadd.f32 %v2367, %v2390
    %2392 = vdwg.mxu0
    %2393 = vmatpush.bf16.msra.mxu0 0
    %2394 = vmatpush.bf16.msra.mxu0 0
    %2395 = vmatpush.bf16.msra.mxu0 0
    %2396 = vmatpush.bf16.msra.mxu0 %v1710
    %2397 = vmatpush.bf16.msra.mxu0 %v1527
    %2398 = vmatpush.bf16.msra.mxu0 %v1525
    %2399 = vmatpush.bf16.msra.mxu0 %v1523
    %2400 = vmatpush.bf16.msra.mxu0 %v1521
    %2401 = vmatmul.bf16.gmra.mxu0 %v2217
    %v2402 = vpop.f32.mrf.mxu0
    %v2403 = vadd.f32 %v2379, %v2402
    %v2404 = vpop.f32.mrf.mxu0
    %v2405 = vadd.f32 %v2381, %v2404
    %2406 = vmatmul.bf16.gmra.mxu0 %v2220
    %v2407 = vpop.f32.mrf.mxu0
    %v2408 = vadd.f32 %v2384, %v2407
    %v2409 = vpop.f32.mrf.mxu0
    %v2410 = vadd.f32 %v2386, %v2409
    %2411 = vmatmul.bf16.gmra.mxu0 %v2223
    %v2412 = vpop.f32.mrf.mxu0
    %v2413 = vadd.f32 %v2389, %v2412
    %v2414 = vpop.f32.mrf.mxu0
    %v2415 = vadd.f32 %v2391, %v2414
    %2416 = vdwg.mxu0
    %2417 = vmatpush.bf16.msra.mxu0 %v1424
    %2418 = vmatpush.bf16.msra.mxu0 %v1422
    %2419 = vmatpush.bf16.msra.mxu0 %v1420
    %2420 = vmatpush.bf16.msra.mxu0 %v1418
    %2421 = vmatpush.bf16.msra.mxu0 %v1416
    %2422 = vmatpush.bf16.msra.mxu0 %v1414
    %2423 = vmatpush.bf16.msra.mxu0 %v1412
    %2424 = vmatpush.bf16.msra.mxu0 %v1410
    %2425 = vmatmul.bf16.gmra.mxu0 %v2171
    %v2426 = vpop.f32.mrf.mxu0
    %v2427 = vadd.f32 %v2085, %v2426
    %v2428 = vpop.f32.mrf.mxu0
    %v2429 = vadd.f32 %v2087, %v2428
    %2430 = vmatmul.bf16.gmra.mxu0 %v2179
    %v2431 = vpop.f32.mrf.mxu0
    %v2432 = vadd.f32 %v2090, %v2431
    %v2433 = vpop.f32.mrf.mxu0
    %v2434 = vadd.f32 %v2092, %v2433
    %2435 = vmatmul.bf16.gmra.mxu0 %v2187
    %v2436 = vpop.f32.mrf.mxu0
    %v2437 = vadd.f32 %v2095, %v2436
    %v2438 = vpop.f32.mrf.mxu0
    %v2439 = vadd.f32 %v2097, %v2438
    %2440 = vdwg.mxu0
    %2441 = vmatpush.bf16.msra.mxu0 %v1440
    %2442 = vmatpush.bf16.msra.mxu0 %v1438
    %2443 = vmatpush.bf16.msra.mxu0 %v1436
    %2444 = vmatpush.bf16.msra.mxu0 %v1434
    %2445 = vmatpush.bf16.msra.mxu0 %v1432
    %2446 = vmatpush.bf16.msra.mxu0 %v1430
    %2447 = vmatpush.bf16.msra.mxu0 %v1428
    %2448 = vmatpush.bf16.msra.mxu0 %v1426
    %2449 = vmatmul.bf16.gmra.mxu0 %v2172
    %v2450 = vpop.f32.mrf.mxu0
    %v2451 = vadd.f32 %v2427, %v2450
    %v2452 = vpop.f32.mrf.mxu0
    %v2453 = vadd.f32 %v2429, %v2452
    %2454 = vmatmul.bf16.gmra.mxu0 %v2180
    %v2455 = vpop.f32.mrf.mxu0
    %v2456 = vadd.f32 %v2432, %v2455
    %v2457 = vpop.f32.mrf.mxu0
    %v2458 = vadd.f32 %v2434, %v2457
    %2459 = vmatmul.bf16.gmra.mxu0 %v2188
    %v2460 = vpop.f32.mrf.mxu0
    %v2461 = vadd.f32 %v2437, %v2460
    %v2462 = vpop.f32.mrf.mxu0
    %v2463 = vadd.f32 %v2439, %v2462
    %2464 = vdwg.mxu0
    %2465 = vmatpush.bf16.msra.mxu0 %v1456
    %2466 = vmatpush.bf16.msra.mxu0 %v1454
    %2467 = vmatpush.bf16.msra.mxu0 %v1452
    %2468 = vmatpush.bf16.msra.mxu0 %v1450
    %2469 = vmatpush.bf16.msra.mxu0 %v1448
    %2470 = vmatpush.bf16.msra.mxu0 %v1446
    %2471 = vmatpush.bf16.msra.mxu0 %v1444
    %2472 = vmatpush.bf16.msra.mxu0 %v1442
    %2473 = vmatmul.bf16.gmra.mxu0 %v2173
    %v2474 = vpop.f32.mrf.mxu0
    %v2475 = vadd.f32 %v2451, %v2474
    %v2476 = vpop.f32.mrf.mxu0
    %v2477 = vadd.f32 %v2453, %v2476
    %2478 = vmatmul.bf16.gmra.mxu0 %v2181
    %v2479 = vpop.f32.mrf.mxu0
    %v2480 = vadd.f32 %v2456, %v2479
    %v2481 = vpop.f32.mrf.mxu0
    %v2482 = vadd.f32 %v2458, %v2481
    %2483 = vmatmul.bf16.gmra.mxu0 %v2189
    %v2484 = vpop.f32.mrf.mxu0
    %v2485 = vadd.f32 %v2461, %v2484
    %v2486 = vpop.f32.mrf.mxu0
    %v2487 = vadd.f32 %v2463, %v2486
    %2488 = vdwg.mxu0
    %2489 = vmatpush.bf16.msra.mxu0 %v1472
    %2490 = vmatpush.bf16.msra.mxu0 %v1470
    %2491 = vmatpush.bf16.msra.mxu0 %v1468
    %2492 = vmatpush.bf16.msra.mxu0 %v1466
    %2493 = vmatpush.bf16.msra.mxu0 %v1464
    %2494 = vmatpush.bf16.msra.mxu0 %v1462
    %2495 = vmatpush.bf16.msra.mxu0 %v1460
    %2496 = vmatpush.bf16.msra.mxu0 %v1458
    %2497 = vmatmul.bf16.gmra.mxu0 %v2174
    %v2498 = vpop.f32.mrf.mxu0
    %v2499 = vadd.f32 %v2475, %v2498
    %v2500 = vpop.f32.mrf.mxu0
    %v2501 = vadd.f32 %v2477, %v2500
    %2502 = vmatmul.bf16.gmra.mxu0 %v2182
    %v2503 = vpop.f32.mrf.mxu0
    %v2504 = vadd.f32 %v2480, %v2503
    %v2505 = vpop.f32.mrf.mxu0
    %v2506 = vadd.f32 %v2482, %v2505
    %2507 = vmatmul.bf16.gmra.mxu0 %v2190
    %v2508 = vpop.f32.mrf.mxu0
    %v2509 = vadd.f32 %v2485, %v2508
    %v2510 = vpop.f32.mrf.mxu0
    %v2511 = vadd.f32 %v2487, %v2510
    %2512 = vdwg.mxu0
    %2513 = vmatpush.bf16.msra.mxu0 %v1488
    %2514 = vmatpush.bf16.msra.mxu0 %v1486
    %2515 = vmatpush.bf16.msra.mxu0 %v1484
    %2516 = vmatpush.bf16.msra.mxu0 %v1482
    %2517 = vmatpush.bf16.msra.mxu0 %v1480
    %2518 = vmatpush.bf16.msra.mxu0 %v1478
    %2519 = vmatpush.bf16.msra.mxu0 %v1476
    %2520 = vmatpush.bf16.msra.mxu0 %v1474
    %2521 = vmatmul.bf16.gmra.mxu0 %v2175
    %v2522 = vpop.f32.mrf.mxu0
    %v2523 = vadd.f32 %v2499, %v2522
    %v2524 = vpop.f32.mrf.mxu0
    %v2525 = vadd.f32 %v2501, %v2524
    %2526 = vmatmul.bf16.gmra.mxu0 %v2183
    %v2527 = vpop.f32.mrf.mxu0
    %v2528 = vadd.f32 %v2504, %v2527
    %v2529 = vpop.f32.mrf.mxu0
    %v2530 = vadd.f32 %v2506, %v2529
    %2531 = vmatmul.bf16.gmra.mxu0 %v2191
    %v2532 = vpop.f32.mrf.mxu0
    %v2533 = vadd.f32 %v2509, %v2532
    %v2534 = vpop.f32.mrf.mxu0
    %v2535 = vadd.f32 %v2511, %v2534
    %2536 = vdwg.mxu0
    %2537 = vmatpush.bf16.msra.mxu0 %v1504
    %2538 = vmatpush.bf16.msra.mxu0 %v1502
    %2539 = vmatpush.bf16.msra.mxu0 %v1500
    %2540 = vmatpush.bf16.msra.mxu0 %v1498
    %2541 = vmatpush.bf16.msra.mxu0 %v1496
    %2542 = vmatpush.bf16.msra.mxu0 %v1494
    %2543 = vmatpush.bf16.msra.mxu0 %v1492
    %2544 = vmatpush.bf16.msra.mxu0 %v1490
    %2545 = vmatmul.bf16.gmra.mxu0 %v2176
    %v2546 = vpop.f32.mrf.mxu0
    %v2547 = vadd.f32 %v2523, %v2546
    %v2548 = vpop.f32.mrf.mxu0
    %v2549 = vadd.f32 %v2525, %v2548
    %2550 = vmatmul.bf16.gmra.mxu0 %v2184
    %v2551 = vpop.f32.mrf.mxu0
    %v2552 = vadd.f32 %v2528, %v2551
    %v2553 = vpop.f32.mrf.mxu0
    %v2554 = vadd.f32 %v2530, %v2553
    %2555 = vmatmul.bf16.gmra.mxu0 %v2192
    %v2556 = vpop.f32.mrf.mxu0
    %v2557 = vadd.f32 %v2533, %v2556
    %v2558 = vpop.f32.mrf.mxu0
    %v2559 = vadd.f32 %v2535, %v2558
    %2560 = vdwg.mxu0
    %2561 = vmatpush.bf16.msra.mxu0 %v1520
    %2562 = vmatpush.bf16.msra.mxu0 %v1518
    %2563 = vmatpush.bf16.msra.mxu0 %v1516
    %2564 = vmatpush.bf16.msra.mxu0 %v1514
    %2565 = vmatpush.bf16.msra.mxu0 %v1512
    %2566 = vmatpush.bf16.msra.mxu0 %v1510
    %2567 = vmatpush.bf16.msra.mxu0 %v1508
    %2568 = vmatpush.bf16.msra.mxu0 %v1506
    %2569 = vmatmul.bf16.gmra.mxu0 %v2177
    %v2570 = vpop.f32.mrf.mxu0
    %v2571 = vadd.f32 %v2547, %v2570
    %v2572 = vpop.f32.mrf.mxu0
    %v2573 = vadd.f32 %v2549, %v2572
    %2574 = vmatmul.bf16.gmra.mxu0 %v2185
    %v2575 = vpop.f32.mrf.mxu0
    %v2576 = vadd.f32 %v2552, %v2575
    %v2577 = vpop.f32.mrf.mxu0
    %v2578 = vadd.f32 %v2554, %v2577
    %2579 = vmatmul.bf16.gmra.mxu0 %v2193
    %v2580 = vpop.f32.mrf.mxu0
    %v2581 = vadd.f32 %v2557, %v2580
    %v2582 = vpop.f32.mrf.mxu0
    %v2583 = vadd.f32 %v2559, %v2582
    %2584 = vdwg.mxu0
    %2585 = vmatpush.bf16.msra.mxu0 0
    %2586 = vmatpush.bf16.msra.mxu0 0
    %2587 = vmatpush.bf16.msra.mxu0 0
    %2588 = vmatpush.bf16.msra.mxu0 %v1713
    %2589 = vmatpush.bf16.msra.mxu0 %v1528
    %2590 = vmatpush.bf16.msra.mxu0 %v1526
    %2591 = vmatpush.bf16.msra.mxu0 %v1524
    %2592 = vmatpush.bf16.msra.mxu0 %v1522
    %2593 = vmatmul.bf16.gmra.mxu0 %v2217
    %v2594 = vpop.f32.mrf.mxu0
    %v2595 = vadd.f32 %v2571, %v2594
    %v2596 = vpop.f32.mrf.mxu0
    %v2597 = vadd.f32 %v2573, %v2596
    %2598 = vmatmul.bf16.gmra.mxu0 %v2220
    %v2599 = vpop.f32.mrf.mxu0
    %v2600 = vadd.f32 %v2576, %v2599
    %v2601 = vpop.f32.mrf.mxu0
    %v2602 = vadd.f32 %v2578, %v2601
    %2603 = vmatmul.bf16.gmra.mxu0 %v2223
    %v2604 = vpop.f32.mrf.mxu0
    %v2605 = vadd.f32 %v2581, %v2604
    %v2606 = vpop.f32.mrf.mxu0
    %v2607 = vadd.f32 %v2583, %v2606
    %2608 = vdwg.mxu0
    %v2609 = vmul.f32 %v2403, %v2410
    %v2610 = vmul.f32 %v2595, %v2602
    %v2611 = vmul.f32 %v2405, %v2413
    %v2612 = vmul.f32 %v2597, %v2605
    %v2613 = vmul.f32 %v2408, %v2415
    %v2614 = vmul.f32 %v2600, %v2607
    %v2615 = vadd.f32 %v2609, %v2611
    %v2616 = vadd.f32 %v2615, %v2613
    %v2617 = vrot.slane %v2616, 4
    %v2618 = vadd.f32 %v2616, %v2617
    %v2619 = vrot.slane %v2618, 2
    %v2620 = vadd.f32 %v2618, %v2619
    %v2621 = vrot.slane %v2620, 1
    %v2622 = vadd.f32 %v2620, %v2621
    %v2623 = vadd.f32 %v2610, %v2612
    %v2624 = vadd.f32 %v2623, %v2614
    %v2625 = vrot.slane %v2624, 4
    %v2626 = vadd.f32 %v2624, %v2625
    %v2627 = vrot.slane %v2626, 2
    %v2628 = vadd.f32 %v2626, %v2627
    %v2629 = vrot.slane %v2628, 1
    %v2630 = vadd.f32 %v2628, %v2629
    %v2631 = vxor.u32 %v2622, 2147483648
    %v2632 = vxor.u32 %v2630, 2147483648
    %v2633 = vmul.f32 %v2631, 1.442695
    %v2634 = vpow.pop %v2633
    %v2635 = vmul.f32 %v2632, 1.442695
    %v2636 = vpow.pop %v2635
    %v2637 = vadd.f32 %v2634, 1.0
    %v2638 = vadd.f32 %v2636, 1.0
    %v2639 = vrcp.pop %v2637
    %v2640 = vmul.f32 %v2637, %v2639
    %v2641 = vsub.f32 1.0, %v2640
    %v2642 = vmul.f32 %v2639, %v2641
    %v2643 = vadd.f32 %v2639, %v2642
    %vm2644 = vweird.f32 %v2637
    %vm2645 = vweird.f32 %v2639
    %vm2646 = vmor %vm2644, %vm2645
    %v2647 = vsel %vm2646, %v2639, %v2643
    %v2648 = vand.u32 2147483647, %v2637
    %vm2649 = vcmp.eq.f32.partialorder %v2648, 8.507059e+37
    %v2650 = vand.u32 %v2637, 2147483648
    %v2651 = vor.u32 1.1754944e-38, %v2650
    %v2652 = vsel %vm2649, %v2651, %v2647
    %v2653 = vmul.f32 1.0, %v2652
    %v2654 = vrcp.pop %v2638
    %v2655 = vmul.f32 %v2638, %v2654
    %v2656 = vsub.f32 1.0, %v2655
    %v2657 = vmul.f32 %v2654, %v2656
    %v2658 = vadd.f32 %v2654, %v2657
    %vm2659 = vweird.f32 %v2638
    %vm2660 = vweird.f32 %v2654
    %vm2661 = vmor %vm2659, %vm2660
    %v2662 = vsel %vm2661, %v2654, %v2658
    %v2663 = vand.u32 2147483647, %v2638
    %vm2664 = vcmp.eq.f32.partialorder %v2663, 8.507059e+37
    %v2665 = vand.u32 %v2638, 2147483648
    %v2666 = vor.u32 1.1754944e-38, %v2665
    %v2667 = vsel %vm2664, %v2666, %v2662
    %v2668 = vmul.f32 1.0, %v2667
    %v2669 = vmul.f32 %v2653, 5.0
    %v2670 = vmul.f32 %v2668, 5.0
    %v2673 = vrot.slane %v2670, 7
    %v2674 = vsel %vm1706, %v2669, %v2673
    %v2676 = vlaneseq
    %vm2677 = vcmp.ge.s32.totalorder %v2676, 0
    %vm2678 = vcmp.lt.s32.totalorder %v2676, 256
    %vm2679 = vmand %vm2677, %vm2678
    %2680 = vst.msk [vmem:[#allocation8] sm:$0x3] %vm2679, %v2674
    // Predicated region
    $region26: #{tpu_custom_call.1} parent=1 // pred_check
      _
    $region27: #{tpu_custom_call.1} parent=1 // pred_check_branch
      %2682 = sbr.rel (0) target = $region29
    $region28: #{tpu_custom_call.1} parent=1 // pred_region
      %2684 = vsyncadd [#allocation4], 0
      %s2686 = sshll.u32 [#allocation8], 4
      %s2687 = int_to_ptr.vmem [resolvable:$true] %s2686
      %s2688 = sshll.u32 %s3, 4
      %s2689 = int_to_ptr.hbm [resolvable:$true] %s2688
      %2691 = dma.vmem_to_hbm [thread:$0]  %s2687, 32, %s2689, [#allocation4]
    $region29: #{tpu_custom_call.1} parent=1 // pred_fallthru
      _
    // Predicated region
    $region30: #{tpu_custom_call.1} parent=1 // pred_check
      _
    $region31: #{tpu_custom_call.1} parent=1 // pred_check_branch
      %2693 = sbr.rel (0) target = $region33
    $region32: #{tpu_custom_call.1} parent=1 // pred_region
      %2695 = dma.done [#allocation4], 32
    $region33: #{tpu_custom_call.1} parent=1 // pred_fallthru
      _
    %2696 = vsyncpa [#allocation3], 1
    %2697 = vsyncpa [#allocation6], 1
    %2698 = vsyncpa [#allocation4], 1

</llo_original>
